<compile_context>
chip_gen: v7x
topology: tpu7x:2x2x1
jax: 0.10.0
libtpu: 0.0.40
codegen_flags: <defaults>
</compile_context>

<pallas_src>
import functools

import jax
import jax.numpy as jnp
from jax.experimental import pallas as pl
from jax.experimental.pallas import tpu as pltpu

LANE = 128


def _gelu_exact(x):
    # exact GELU (matches torch.nn.GELU(approximate='none'))
    return 0.5 * x * (1.0 + jax.lax.erf(x * (2.0 ** -0.5)))


def _round_up(n, m):
    return (n + m - 1) // m * m


def _vmem_limit_bytes(block_bytes):
    # ~2x for double-buffered pipelining + headroom for compiler scratch,
    # capped at v7x physical per-core VMEM so one setting works on all chips.
    return int(min(2 * block_bytes + (8 << 20), 64 << 20))


def _largest_divisor_leq(n, cap):
    cap = int(max(1, min(n, cap)))
    for d in range(cap, 0, -1):
        if n % d == 0:
            return d
    return 1


# --------------------------- pass 1: fc1 + BN1 stats -------------------------
def _fc1_stats_kernel(m_total, tile_m, need_mask,
                      x_ref, w1_ref, b1_ref, h1_ref, st1_ref):
    # 1x1 conv == channel matmul on the MXU (bf16 or f32 operands, f32 acc).
    h = jnp.dot(x_ref[...], w1_ref[...], preferred_element_type=jnp.float32)
    h = h + b1_ref[...]
    # One-pass BN statistics; mask rows of a (possible) partial last block.
    if need_mask:
        i = pl.program_id(0)
        rows = i * tile_m + jax.lax.broadcasted_iota(jnp.int32, (tile_m, 1), 0)
        hv = jnp.where(rows < m_total, h, 0.0)
    else:
        hv = h
    st1_ref[0:1, :] = jnp.sum(hv, axis=0, keepdims=True)
    st1_ref[1:2, :] = jnp.sum(hv * hv, axis=0, keepdims=True)
    h1_ref[...] = h.astype(h1_ref.dtype)


# ---------------- pass 2: BN1 affine + GELU + DW 3x3 + BN2 stats -------------
def _dw_stats_kernel(h1_ref, sc1_ref, sh1_ref, wdw_ref, b2_ref,
                     h2_ref, st2_ref, pad_ref):
    nb, H, W, ch = h1_ref.shape
    a = h1_ref[...].astype(jnp.float32)                      # (nb, H, W, C)
    a = a * sc1_ref[...] + sh1_ref[...]                      # BN1 (train) affine
    a = _gelu_exact(a)

    # Depthwise 3x3, stride 1, padding 1: zero only the 1-pixel border of the
    # pad buffer, write the interior directly (no redundant full zero fill).
    pad_ref[:, 0:1, :, :] = jnp.zeros((nb, 1, W + 2, ch), pad_ref.dtype)
    pad_ref[:, H + 1:H + 2, :, :] = jnp.zeros((nb, 1, W + 2, ch), pad_ref.dtype)
    pad_ref[:, 1:H + 1, 0:1, :] = jnp.zeros((nb, H, 1, ch), pad_ref.dtype)
    pad_ref[:, 1:H + 1, W + 1:W + 2, :] = jnp.zeros((nb, H, 1, ch), pad_ref.dtype)
    pad_ref[:, 1:H + 1, 1:W + 1, :] = a.astype(pad_ref.dtype)

    acc = jnp.zeros((nb, H, W, ch), jnp.float32)
    for ki in range(3):
        for kj in range(3):
            tap = wdw_ref[ki * 3 + kj, :]                    # (C,)
            acc = acc + (pad_ref[:, ki:ki + H, kj:kj + W, :]
                         .astype(jnp.float32) * tap)
    h2 = acc + b2_ref[...]
    h2_ref[...] = h2.astype(h2_ref.dtype)

    # One-pass BN2 statistics for this image block (combined outside kernel).
    h2f = h2.reshape(nb * H * W, ch)
    st2_ref[0:1, :] = jnp.sum(h2f, axis=0, keepdims=True)
    st2_ref[1:2, :] = jnp.sum(h2f * h2f, axis=0, keepdims=True)


# ----------------------- pass 3: BN2 affine + GELU + fc3 ---------------------
def _fc3_kernel(h2_ref, sc2_ref, sh2_ref, w3_ref, b3_ref, y_ref, *, mxu_dtype):
    a = h2_ref[...].astype(jnp.float32)
    a = a * sc2_ref[...] + sh2_ref[...]                      # BN2 (train) affine
    a = _gelu_exact(a)
    y = jnp.dot(a.astype(mxu_dtype), w3_ref[...],
                preferred_element_type=jnp.float32)
    y_ref[...] = (y + b3_ref[...]).astype(y_ref.dtype)


def dwmlp_forward(x, params, H, W, *, compute_dtype=jnp.float32,
                  tile_m=512, eps=1e-5):
    """x: (B, N, C_in) with N == H*W.  Returns (B, N, C_out)."""
    B, N, C_in = x.shape
    assert N == H * W
    hidden = params["w1"].shape[1]
    C_out = params["w3"].shape[1]

    f32 = jnp.float32
    inter_dtype = compute_dtype        # HBM intermediates (bf16 halves traffic)
    esz = jnp.dtype(compute_dtype).itemsize

    # Lane-dense channel padding (multiples of 128); semantically inert
    # (zero weights/biases/gammas for padded channels keep them exactly 0).
    cin_p = _round_up(C_in, LANE)
    ch_p = _round_up(hidden, LANE)
    cout_p = _round_up(C_out, LANE)

    M = B * N
    tm = M if M <= tile_m else _round_up(tile_m, 8)
    g_m = pl.cdiv(M, tm)
    need_mask = (M % tm) != 0

    def pad2(a, r, c, dt):
        return jnp.pad(a, ((0, r - a.shape[0]), (0, c - a.shape[1]))).astype(dt)

    x2d = pad2(x.reshape(M, C_in), M, cin_p, compute_dtype)
    w1 = pad2(params["w1"], cin_p, ch_p, compute_dtype)
    b1 = pad2(params["b1"], 1, ch_p, f32)
    g1 = pad2(params["g1"], 1, ch_p, f32)
    be1 = pad2(params["be1"], 1, ch_p, f32)
    wdw = pad2(params["wdw"], 9, ch_p, f32)
    b2 = pad2(params["b2"], 1, ch_p, f32)
    g2 = pad2(params["g2"], 1, ch_p, f32)
    be2 = pad2(params["be2"], 1, ch_p, f32)
    w3 = pad2(params["w3"], ch_p, cout_p, compute_dtype)
    b3 = pad2(params["b3"], 1, cout_p, f32)

    # ------------------------------- pass 1 ----------------------------------
    p1_block = (tm * cin_p + cin_p * ch_p + tm * ch_p) * esz + 3 * ch_p * 4
    h1, st1 = pl.pallas_call(
        functools.partial(_fc1_stats_kernel, M, tm, need_mask),
        grid=(g_m,),
        in_specs=[
            pl.BlockSpec((tm, cin_p), lambda i: (i, 0)),
            pl.BlockSpec((cin_p, ch_p), lambda i: (0, 0)),
            pl.BlockSpec((1, ch_p), lambda i: (0, 0)),
        ],
        out_specs=(
            pl.BlockSpec((tm, ch_p), lambda i: (i, 0)),
            pl.BlockSpec((None, 2, ch_p), lambda i: (i, 0, 0)),
        ),
        out_shape=(
            jax.ShapeDtypeStruct((M, ch_p), inter_dtype),
            jax.ShapeDtypeStruct((g_m, 2, ch_p), f32),
        ),
        compiler_params=pltpu.CompilerParams(
            dimension_semantics=("parallel",),
            vmem_limit_bytes=_vmem_limit_bytes(p1_block)),
        cost_estimate=pl.CostEstimate(
            flops=2 * M * cin_p * ch_p, transcendentals=0,
            bytes_accessed=(M * cin_p + cin_p * ch_p + M * ch_p) * esz),
    )(x2d, w1, b1)

    # BN1 (training mode) scale/shift from one-pass sums. NOTE: E[x^2]-mean^2
    # accumulated in f32 (biased variance, eps=1e-5, matches torch train BN).
    s1 = jnp.sum(st1, axis=0)
    mean1 = s1[0:1] / M
    var1 = s1[1:2] / M - mean1 * mean1
    scale1 = g1 * jax.lax.rsqrt(var1 + eps)
    shift1 = be1 - mean1 * scale1

    # ------------------------------- pass 2 ----------------------------------
    # Pack several images per grid step: biggest divisor of B within an ~8 MiB
    # per-block VMEM budget, while keeping >=2 grid steps for megacore sharding.
    per_img = (2 * H * W + (H + 2) * (W + 2)) * ch_p * esz
    cap = (8 << 20) // max(per_img, 1)
    if B >= 2:
        cap = min(cap, max(1, B // 2))
    tile_b = _largest_divisor_leq(B, cap)
    g_b = B // tile_b

    h1_4d = h1.reshape(B, H, W, ch_p)
    p2_block = tile_b * per_img + 16 * ch_p * 4
    h2, st2 = pl.pallas_call(
        _dw_stats_kernel,
        grid=(g_b,),
        in_specs=[
            pl.BlockSpec((tile_b, H, W, ch_p), lambda b: (b, 0, 0, 0)),
            pl.BlockSpec((1, ch_p), lambda b: (0, 0)),
            pl.BlockSpec((1, ch_p), lambda b: (0, 0)),
            pl.BlockSpec((9, ch_p), lambda b: (0, 0)),
            pl.BlockSpec((1, ch_p), lambda b: (0, 0)),
        ],
        out_specs=(
            pl.BlockSpec((tile_b, H, W, ch_p), lambda b: (b, 0, 0, 0)),
            pl.BlockSpec((None, 2, ch_p), lambda b: (b, 0, 0)),
        ),
        out_shape=(
            jax.ShapeDtypeStruct((B, H, W, ch_p), inter_dtype),
            jax.ShapeDtypeStruct((g_b, 2, ch_p), f32),
        ),
        scratch_shapes=[pltpu.VMEM((tile_b, H + 2, W + 2, ch_p), inter_dtype)],
        compiler_params=pltpu.CompilerParams(
            dimension_semantics=("parallel",),
            vmem_limit_bytes=_vmem_limit_bytes(p2_block)),
        cost_estimate=pl.CostEstimate(
            flops=28 * M * ch_p, transcendentals=M * ch_p,
            bytes_accessed=2 * M * ch_p * esz),
    )(h1_4d, scale1, shift1, wdw, b2)

    s2 = jnp.sum(st2, axis=0)
    mean2 = s2[0:1] / M
    var2 = s2[1:2] / M - mean2 * mean2
    scale2 = g2 * jax.lax.rsqrt(var2 + eps)
    shift2 = be2 - mean2 * scale2

    # ------------------------------- pass 3 ----------------------------------
    h2_2d = h2.reshape(M, ch_p)
    p3_block = (tm * ch_p + ch_p * cout_p) * esz + tm * cout_p * 4 + 3 * ch_p * 4
    y = pl.pallas_call(
        functools.partial(_fc3_kernel, mxu_dtype=compute_dtype),
        grid=(g_m,),
        in_specs=[
            pl.BlockSpec((tm, ch_p), lambda i: (i, 0)),
            pl.BlockSpec((1, ch_p), lambda i: (0, 0)),
            pl.BlockSpec((1, ch_p), lambda i: (0, 0)),
            pl.BlockSpec((ch_p, cout_p), lambda i: (0, 0)),
            pl.BlockSpec((1, cout_p), lambda i: (0, 0)),
        ],
        out_specs=pl.BlockSpec((tm, cout_p), lambda i: (i, 0)),
        out_shape=jax.ShapeDtypeStruct((M, cout_p), x.dtype),
        compiler_params=pltpu.CompilerParams(
            dimension_semantics=("parallel",),
            vmem_limit_bytes=_vmem_limit_bytes(p3_block)),
        cost_estimate=pl.CostEstimate(
            flops=2 * M * ch_p * cout_p, transcendentals=M * ch_p,
            bytes_accessed=(M * ch_p + ch_p * cout_p) * esz + M * cout_p * 4),
    )(h2_2d, scale2, shift2, w3, b3)

    # lane-dense (128-padded) output store in-kernel; slice the real channels here.
    return y.reshape(B, N, cout_p)[:, :, :C_out]


# -------------------- pure-JAX reference (PyTorch NCHW semantics) ------------
def _ref_bn_train(x, gamma, beta, eps=1e-5):
    mean = jnp.mean(x, axis=(0, 2, 3), keepdims=True)
    var = jnp.mean((x - mean) ** 2, axis=(0, 2, 3), keepdims=True)
    g = gamma.reshape(1, -1, 1, 1)
    b = beta.reshape(1, -1, 1, 1)
    return (x - mean) / jnp.sqrt(var + eps) * g + b


def dwmlp_reference(x, params, H, W):
    B, N, C = x.shape
    hidden = params["w1"].shape[1]
    xi = jnp.transpose(x, (0, 2, 1)).reshape(B, C, H, W)

    w1 = jnp.transpose(params["w1"])[:, :, None, None]           # (hid, C_in, 1, 1)
    h = jax.lax.conv_general_dilated(
        xi, w1, (1, 1), "VALID", dimension_numbers=("NCHW", "OIHW", "NCHW"))
    h = h + params["b1"].reshape(1, -1, 1, 1)
    h = _gelu_exact(_ref_bn_train(h, params["g1"], params["be1"]))

    wdw = jnp.transpose(params["wdw"]).reshape(hidden, 1, 3, 3)   # (hid, 1, 3, 3)
    h = jax.lax.conv_general_dilated(
        h, wdw, (1, 1), ((1, 1), (1, 1)),
        dimension_numbers=("NCHW", "OIHW", "NCHW"), feature_group_count=hidden)
    h = h + params["b2"].reshape(1, -1, 1, 1)
    h = _gelu_exact(_ref_bn_train(h, params["g2"], params["be2"]))

    w3 = jnp.transpose(params["w3"])[:, :, None, None]            # (C_out, hid, 1, 1)
    y = jax.lax.conv_general_dilated(
        h, w3, (1, 1), "VALID", dimension_numbers=("NCHW", "OIHW", "NCHW"))
    y = y + params["b3"].reshape(1, -1, 1, 1)
    return jnp.transpose(y.reshape(B, -1, H * W), (0, 2, 1))


# ------------------------------------------------------------------------------
if __name__ == "__main__":
    B, H, W = 2, 8, 8
    N = H * W
    C_in, hidden, C_out = 16, 32, 16

    key = jax.random.PRNGKey(0)
    ks = jax.random.split(key, 12)
    x = jax.random.normal(ks[0], (B, N, C_in), dtype=jnp.float32)

    params = {
        # fc1: Conv2d(C_in, hidden, 1) -> weight stored transposed (C_in, hidden)
        "w1": jax.random.normal(ks[1], (C_in, hidden), jnp.float32) * 0.1,
        "b1": jax.random.normal(ks[2], (1, hidden), jnp.float32) * 0.1,
        "g1": 1.0 + jax.random.normal(ks[3], (1, hidden), jnp.float32) * 0.05,
        "be1": jax.random.normal(ks[4], (1, hidden), jnp.float32) * 0.05,
        # fc2: depthwise Conv2d(hidden, hidden, 3, groups=hidden) -> (9, hidden),
        # tap index = ki*3 + kj, i.e. wdw[ki*3+kj, c] == torch_w[c, 0, ki, kj]
        "wdw": jax.random.normal(ks[5], (9, hidden), jnp.float32) * 0.1,
        "b2": jax.random.normal(ks[6], (1, hidden), jnp.float32) * 0.1,
        "g2": 1.0 + jax.random.normal(ks[7], (1, hidden), jnp.float32) * 0.05,
        "be2": jax.random.normal(ks[8], (1, hidden), jnp.float32) * 0.05,
        # fc3: Conv2d(hidden, C_out, 1) -> (hidden, C_out)
        "w3": jax.random.normal(ks[9], (hidden, C_out), jnp.float32) * 0.1,
        "b3": jax.random.normal(ks[10], (1, C_out), jnp.float32) * 0.1,
    }

    # f32 path: exact-semantics check against the NCHW conv reference.
    fwd_f32 = jax.jit(lambda xx, pp: dwmlp_forward(xx, pp, H, W,
                                                   compute_dtype=jnp.float32))
    out = jax.block_until_ready(fwd_f32(x, params))
    assert out.shape == (B, N, C_out), out.shape

    ref = jax.block_until_ready(dwmlp_reference(x, params, H, W))
    err = float(jnp.max(jnp.abs(out - ref)))
    assert jnp.allclose(out, ref, atol=5e-4, rtol=5e-4), err

    # bf16 MXU / bf16-intermediate path (production setting on v5e/v6e/v7x);
    # looser tolerance due to bf16 operand rounding.
    fwd_bf16 = jax.jit(lambda xx, pp: dwmlp_forward(xx, pp, H, W,
                                                    compute_dtype=jnp.bfloat16))
    out_bf16 = jax.block_until_ready(fwd_bf16(x, params))
    err_bf16 = float(jnp.max(jnp.abs(out_bf16 - ref)))
    assert jnp.allclose(out_bf16, ref, atol=1e-1, rtol=1e-1), err_bf16

    print("KERNEL_OK")
</pallas_src>

<mosaic_0001>
module attributes {stable_mosaic.version = 11 : i64} {
  func.func @_fc1_stats_kernel(%arg0: i32, %arg1: memref<128x128xf32, #tpu.memory_space<vmem>>, %arg2: memref<128x128xf32, #tpu.memory_space<vmem>>, %arg3: memref<1x128xf32, #tpu.memory_space<vmem>>, %arg4: memref<128x128xf32, #tpu.memory_space<vmem>>, %arg5: memref<1x2x128xf32, #tpu.memory_space<vmem>>) attributes {dimension_semantics = [#tpu.dimension_semantics<parallel>], iteration_bounds = array<i64: 1>, scalar_prefetch = 0 : i64, scratch_operands = 0 : i64, tpu.core_type = #tpu.core_type<tc>, window_params = [{transform_indices = @transform_0, window_bounds = array<i64: 128, 128>}, {pipeline_mode = #tpu.pipeline_mode<synchronous>, transform_indices = @transform_1, window_bounds = array<i64: 128, 128>}, {pipeline_mode = #tpu.pipeline_mode<synchronous>, transform_indices = @transform_2, window_bounds = array<i64: 1, 128>}, {transform_indices = @transform_3, window_bounds = array<i64: 128, 128>}, {transform_indices = @transform_4, window_bounds = array<i64: 1, 2, 128>}]} {
    %c0 = arith.constant 0 : index
    %c0_0 = arith.constant 0 : index
    %0 = vector.load %arg1[%c0, %c0_0] : memref<128x128xf32, #tpu.memory_space<vmem>>, vector<128x128xf32>
    %c0_1 = arith.constant 0 : index
    %c0_2 = arith.constant 0 : index
    %1 = vector.load %arg2[%c0_1, %c0_2] : memref<128x128xf32, #tpu.memory_space<vmem>>, vector<128x128xf32>
    %cst = arith.constant dense<0.000000e+00> : vector<128x128xf32>
    %2 = tpu.matmul %0, %1, %cst {dimension_numbers = #tpu.dot_dimension_numbers<[1], [0], [0], [1], [0, 0, 1, 1], [], []>} : vector<128x128xf32>, vector<128x128xf32>, vector<128x128xf32> -> vector<128x128xf32>
    %c0_3 = arith.constant 0 : index
    %c0_4 = arith.constant 0 : index
    %3 = vector.load %arg3[%c0_3, %c0_4] : memref<1x128xf32, #tpu.memory_space<vmem>>, vector<1x128xf32>
    %4 = vector.broadcast %3 : vector<1x128xf32> to vector<128x128xf32>
    %5 = arith.addf %2, %4 : vector<128x128xf32>
    %cst_5 = arith.constant dense<0.000000e+00> : vector<128xf32>
    %6 = vector.multi_reduction <add>, %5, %cst_5 [0] : vector<128x128xf32> to vector<128xf32>
    %7 = vector.shape_cast %6 : vector<128xf32> to vector<1x128xf32>
    %c0_6 = arith.constant 0 : index
    %c0_7 = arith.constant 0 : index
    %c0_8 = arith.constant 0 : index
    %8 = vector.load %arg5[%c0_6, %c0_7, %c0_8] : memref<1x2x128xf32, #tpu.memory_space<vmem>>, vector<1x1x128xf32>
    %9 = vector.shape_cast %8 : vector<1x1x128xf32> to vector<1x128xf32>
    %10 = vector.shape_cast %7 : vector<1x128xf32> to vector<1x1x128xf32>
    tpu.vector_store %arg5[%c0_6, %c0_7, %c0_8], %10 {strides = array<i32>} : memref<1x2x128xf32, #tpu.memory_space<vmem>>, vector<1x1x128xf32>,
    %11 = arith.mulf %5, %5 : vector<128x128xf32>
    %cst_9 = arith.constant dense<0.000000e+00> : vector<128xf32>
    %12 = vector.multi_reduction <add>, %11, %cst_9 [0] : vector<128x128xf32> to vector<128xf32>
    %13 = vector.shape_cast %12 : vector<128xf32> to vector<1x128xf32>
    %c0_10 = arith.constant 0 : index
    %c1 = arith.constant 1 : index
    %c0_11 = arith.constant 0 : index
    %14 = vector.load %arg5[%c0_10, %c1, %c0_11] : memref<1x2x128xf32, #tpu.memory_space<vmem>>, vector<1x1x128xf32>
    %15 = vector.shape_cast %14 : vector<1x1x128xf32> to vector<1x128xf32>
    %16 = vector.shape_cast %13 : vector<1x128xf32> to vector<1x1x128xf32>
    tpu.vector_store %arg5[%c0_10, %c1, %c0_11], %16 {strides = array<i32>} : memref<1x2x128xf32, #tpu.memory_space<vmem>>, vector<1x1x128xf32>,
    %c0_12 = arith.constant 0 : index
    %c0_13 = arith.constant 0 : index
    %17 = vector.load %arg4[%c0_12, %c0_13] : memref<128x128xf32, #tpu.memory_space<vmem>>, vector<128x128xf32>
    tpu.vector_store %arg4[%c0_12, %c0_13], %5 {strides = array<i32>} : memref<128x128xf32, #tpu.memory_space<vmem>>, vector<128x128xf32>,
    return
  }
  func.func @transform_0(%arg0: i32) -> (i32, i32) {
    %c0_i32 = arith.constant 0 : i32
    %c0_i32_0 = arith.constant 0 : i32
    return %arg0, %c0_i32 : i32, i32
  }
  func.func @transform_1(%arg0: i32) -> (i32, i32) {
    %c0_i32 = arith.constant 0 : i32
    %c0_i32_0 = arith.constant 0 : i32
    %c0_i32_1 = arith.constant 0 : i32
    return %c0_i32, %c0_i32_0 : i32, i32
  }
  func.func @transform_2(%arg0: i32) -> (i32, i32) {
    %c0_i32 = arith.constant 0 : i32
    %c0_i32_0 = arith.constant 0 : i32
    %c0_i32_1 = arith.constant 0 : i32
    return %c0_i32, %c0_i32_0 : i32, i32
  }
  func.func @transform_3(%arg0: i32) -> (i32, i32) {
    %c0_i32 = arith.constant 0 : i32
    %c0_i32_0 = arith.constant 0 : i32
    return %arg0, %c0_i32 : i32, i32
  }
  func.func @transform_4(%arg0: i32) -> (i32, i32, i32) {
    %c0_i32 = arith.constant 0 : i32
    %c0_i32_0 = arith.constant 0 : i32
    %c0_i32_1 = arith.constant 0 : i32
    return %arg0, %c0_i32, %c0_i32_0 : i32, i32, i32
  }
}

module attributes {stable_mosaic.version = 11 : i64} {
  func.func @_dw_stats_kernel(%arg0: i32, %arg1: memref<1x8x8x128xf32, #tpu.memory_space<vmem>>, %arg2: memref<1x128xf32, #tpu.memory_space<vmem>>, %arg3: memref<1x128xf32, #tpu.memory_space<vmem>>, %arg4: memref<9x128xf32, #tpu.memory_space<vmem>>, %arg5: memref<1x128xf32, #tpu.memory_space<vmem>>, %arg6: memref<1x8x8x128xf32, #tpu.memory_space<vmem>>, %arg7: memref<1x2x128xf32, #tpu.memory_space<vmem>>, %arg8: memref<1x10x10x128xf32, #tpu.memory_space<vmem>>) attributes {dimension_semantics = [#tpu.dimension_semantics<parallel>], iteration_bounds = array<i64: 2>, scalar_prefetch = 0 : i64, scratch_operands = 1 : i64, tpu.core_type = #tpu.core_type<tc>, window_params = [{transform_indices = @transform_0, window_bounds = array<i64: 1, 8, 8, 128>}, {pipeline_mode = #tpu.pipeline_mode<synchronous>, transform_indices = @transform_1, window_bounds = array<i64: 1, 128>}, {pipeline_mode = #tpu.pipeline_mode<synchronous>, transform_indices = @transform_2, window_bounds = array<i64: 1, 128>}, {pipeline_mode = #tpu.pipeline_mode<synchronous>, transform_indices = @transform_3, window_bounds = array<i64: 9, 128>}, {pipeline_mode = #tpu.pipeline_mode<synchronous>, transform_indices = @transform_4, window_bounds = array<i64: 1, 128>}, {transform_indices = @transform_5, window_bounds = array<i64: 1, 8, 8, 128>}, {transform_indices = @transform_6, window_bounds = array<i64: 1, 2, 128>}]} {
    %c0 = arith.constant 0 : index
    %c0_0 = arith.constant 0 : index
    %c0_1 = arith.constant 0 : index
    %c0_2 = arith.constant 0 : index
    %0 = vector.load %arg1[%c0, %c0_0, %c0_1, %c0_2] : memref<1x8x8x128xf32, #tpu.memory_space<vmem>>, vector<1x8x8x128xf32>
    %c0_3 = arith.constant 0 : index
    %c0_4 = arith.constant 0 : index
    %1 = vector.load %arg2[%c0_3, %c0_4] : memref<1x128xf32, #tpu.memory_space<vmem>>, vector<1x128xf32>
    %2 = vector.shape_cast %1 : vector<1x128xf32> to vector<1x1x1x128xf32>
    %3 = vector.broadcast %2 : vector<1x1x1x128xf32> to vector<1x8x8x128xf32>
    %4 = arith.mulf %0, %3 : vector<1x8x8x128xf32>
    %c0_5 = arith.constant 0 : index
    %c0_6 = arith.constant 0 : index
    %5 = vector.load %arg3[%c0_5, %c0_6] : memref<1x128xf32, #tpu.memory_space<vmem>>, vector<1x128xf32>
    %6 = vector.shape_cast %5 : vector<1x128xf32> to vector<1x1x1x128xf32>
    %7 = vector.broadcast %6 : vector<1x1x1x128xf32> to vector<1x8x8x128xf32>
    %8 = arith.addf %4, %7 : vector<1x8x8x128xf32>
    %cst = arith.constant 5.000000e-01 : f32
    %9 = vector.broadcast %cst : f32 to vector<1x8x8x128xf32>
    %10 = arith.mulf %9, %8 : vector<1x8x8x128xf32>
    %cst_7 = arith.constant 0.707106769 : f32
    %11 = vector.broadcast %cst_7 : f32 to vector<1x8x8x128xf32>
    %12 = arith.mulf %8, %11 : vector<1x8x8x128xf32>
    %13 = math.erf %12 : vector<1x8x8x128xf32>
    %cst_8 = arith.constant 1.000000e+00 : f32
    %14 = vector.broadcast %cst_8 : f32 to vector<1x8x8x128xf32>
    %15 = arith.addf %14, %13 : vector<1x8x8x128xf32>
    %16 = arith.mulf %10, %15 : vector<1x8x8x128xf32>
    %cst_9 = arith.constant 0.000000e+00 : f32
    %17 = vector.broadcast %cst_9 : f32 to vector<1x1x10x128xf32>
    %c0_10 = arith.constant 0 : index
    %c0_11 = arith.constant 0 : index
    %c0_12 = arith.constant 0 : index
    %c0_13 = arith.constant 0 : index
    %18 = vector.load %arg8[%c0_10, %c0_11, %c0_12, %c0_13] : memref<1x10x10x128xf32, #tpu.memory_space<vmem>>, vector<1x1x10x128xf32>
    tpu.vector_store %arg8[%c0_10, %c0_11, %c0_12, %c0_13], %17 {strides = array<i32>} : memref<1x10x10x128xf32, #tpu.memory_space<vmem>>, vector<1x1x10x128xf32>,
    %cst_14 = arith.constant 0.000000e+00 : f32
    %19 = vector.broadcast %cst_14 : f32 to vector<1x1x10x128xf32>
    %c0_15 = arith.constant 0 : index
    %c9 = arith.constant 9 : index
    %c0_16 = arith.constant 0 : index
    %c0_17 = arith.constant 0 : index
    %20 = vector.load %arg8[%c0_15, %c9, %c0_16, %c0_17] : memref<1x10x10x128xf32, #tpu.memory_space<vmem>>, vector<1x1x10x128xf32>
    tpu.vector_store %arg8[%c0_15, %c9, %c0_16, %c0_17], %19 {strides = array<i32>} : memref<1x10x10x128xf32, #tpu.memory_space<vmem>>, vector<1x1x10x128xf32>,
    %cst_18 = arith.constant 0.000000e+00 : f32
    %21 = vector.broadcast %cst_18 : f32 to vector<1x8x1x128xf32>
    %c0_19 = arith.constant 0 : index
    %c1 = arith.constant 1 : index
    %c0_20 = arith.constant 0 : index
    %c0_21 = arith.constant 0 : index
    %22 = vector.load %arg8[%c0_19, %c1, %c0_20, %c0_21] : memref<1x10x10x128xf32, #tpu.memory_space<vmem>>, vector<1x8x1x128xf32>
    tpu.vector_store %arg8[%c0_19, %c1, %c0_20, %c0_21], %21 {strides = array<i32>} : memref<1x10x10x128xf32, #tpu.memory_space<vmem>>, vector<1x8x1x128xf32>,
    %cst_22 = arith.constant 0.000000e+00 : f32
    %23 = vector.broadcast %cst_22 : f32 to vector<1x8x1x128xf32>
    %c0_23 = arith.constant 0 : index
    %c1_24 = arith.constant 1 : index
    %c9_25 = arith.constant 9 : index
    %c0_26 = arith.constant 0 : index
    %24 = vector.load %arg8[%c0_23, %c1_24, %c9_25, %c0_26] : memref<1x10x10x128xf32, #tpu.memory_space<vmem>>, vector<1x8x1x128xf32>
    tpu.vector_store %arg8[%c0_23, %c1_24, %c9_25, %c0_26], %23 {strides = array<i32>} : memref<1x10x10x128xf32, #tpu.memory_space<vmem>>, vector<1x8x1x128xf32>,
    %c0_27 = arith.constant 0 : index
    %c1_28 = arith.constant 1 : index
    %c1_29 = arith.constant 1 : index
    %c0_30 = arith.constant 0 : index
    %25 = vector.load %arg8[%c0_27, %c1_28, %c1_29, %c0_30] : memref<1x10x10x128xf32, #tpu.memory_space<vmem>>, vector<1x8x8x128xf32>
    tpu.vector_store %arg8[%c0_27, %c1_28, %c1_29, %c0_30], %16 {strides = array<i32>} : memref<1x10x10x128xf32, #tpu.memory_space<vmem>>, vector<1x8x8x128xf32>,
    %cst_31 = arith.constant 0.000000e+00 : f32
    %26 = vector.broadcast %cst_31 : f32 to vector<1x8x8x128xf32>
    %c0_32 = arith.constant 0 : index
    %c0_33 = arith.constant 0 : index
    %27 = vector.load %arg4[%c0_32, %c0_33] : memref<9x128xf32, #tpu.memory_space<vmem>>, vector<1x128xf32>
    %28 = vector.shape_cast %27 : vector<1x128xf32> to vector<128xf32>
    %c0_34 = arith.constant 0 : index
    %c0_35 = arith.constant 0 : index
    %c0_36 = arith.constant 0 : index
    %c0_37 = arith.constant 0 : index
    %29 = vector.load %arg8[%c0_34, %c0_35, %c0_36, %c0_37] : memref<1x10x10x128xf32, #tpu.memory_space<vmem>>, vector<1x8x8x128xf32>
    %30 = vector.shape_cast %28 : vector<128xf32> to vector<1x1x1x128xf32>
    %31 = vector.broadcast %30 : vector<1x1x1x128xf32> to vector<1x8x8x128xf32>
    %32 = arith.mulf %29, %31 : vector<1x8x8x128xf32>
    %33 = arith.addf %26, %32 : vector<1x8x8x128xf32>
    %c1_38 = arith.constant 1 : index
    %c0_39 = arith.constant 0 : index
    %34 = vector.load %arg4[%c1_38, %c0_39] : memref<9x128xf32, #tpu.memory_space<vmem>>, vector<1x128xf32>
    %35 = vector.shape_cast %34 : vector<1x128xf32> to vector<128xf32>
    %c0_40 = arith.constant 0 : index
    %c0_41 = arith.constant 0 : index
    %c1_42 = arith.constant 1 : index
    %c0_43 = arith.constant 0 : index
    %36 = vector.load %arg8[%c0_40, %c0_41, %c1_42, %c0_43] : memref<1x10x10x128xf32, #tpu.memory_space<vmem>>, vector<1x8x8x128xf32>
    %37 = vector.shape_cast %35 : vector<128xf32> to vector<1x1x1x128xf32>
    %38 = vector.broadcast %37 : vector<1x1x1x128xf32> to vector<1x8x8x128xf32>
    %39 = arith.mulf %36, %38 : vector<1x8x8x128xf32>
    %40 = arith.addf %33, %39 : vector<1x8x8x128xf32>
    %c2 = arith.constant 2 : index
    %c0_44 = arith.constant 0 : index
    %41 = vector.load %arg4[%c2, %c0_44] : memref<9x128xf32, #tpu.memory_space<vmem>>, vector<1x128xf32>
    %42 = vector.shape_cast %41 : vector<1x128xf32> to vector<128xf32>
    %c0_45 = arith.constant 0 : index
    %c0_46 = arith.constant 0 : index
    %c2_47 = arith.constant 2 : index
    %c0_48 = arith.constant 0 : index
    %43 = vector.load %arg8[%c0_45, %c0_46, %c2_47, %c0_48] : memref<1x10x10x128xf32, #tpu.memory_space<vmem>>, vector<1x8x8x128xf32>
    %44 = vector.shape_cast %42 : vector<128xf32> to vector<1x1x1x128xf32>
    %45 = vector.broadcast %44 : vector<1x1x1x128xf32> to vector<1x8x8x128xf32>
    %46 = arith.mulf %43, %45 : vector<1x8x8x128xf32>
    %47 = arith.addf %40, %46 : vector<1x8x8x128xf32>
    %c3 = arith.constant 3 : index
    %c0_49 = arith.constant 0 : index
    %48 = vector.load %arg4[%c3, %c0_49] : memref<9x128xf32, #tpu.memory_space<vmem>>, vector<1x128xf32>
    %49 = vector.shape_cast %48 : vector<1x128xf32> to vector<128xf32>
    %c0_50 = arith.constant 0 : index
    %c1_51 = arith.constant 1 : index
    %c0_52 = arith.constant 0 : index
    %c0_53 = arith.constant 0 : index
    %50 = vector.load %arg8[%c0_50, %c1_51, %c0_52, %c0_53] : memref<1x10x10x128xf32, #tpu.memory_space<vmem>>, vector<1x8x8x128xf32>
    %51 = vector.shape_cast %49 : vector<128xf32> to vector<1x1x1x128xf32>
    %52 = vector.broadcast %51 : vector<1x1x1x128xf32> to vector<1x8x8x128xf32>
    %53 = arith.mulf %50, %52 : vector<1x8x8x128xf32>
    %54 = arith.addf %47, %53 : vector<1x8x8x128xf32>
    %c4 = arith.constant 4 : index
    %c0_54 = arith.constant 0 : index
    %55 = vector.load %arg4[%c4, %c0_54] : memref<9x128xf32, #tpu.memory_space<vmem>>, vector<1x128xf32>
    %56 = vector.shape_cast %55 : vector<1x128xf32> to vector<128xf32>
    %c0_55 = arith.constant 0 : index
    %c1_56 = arith.constant 1 : index
    %c1_57 = arith.constant 1 : index
    %c0_58 = arith.constant 0 : index
    %57 = vector.load %arg8[%c0_55, %c1_56, %c1_57, %c0_58] : memref<1x10x10x128xf32, #tpu.memory_space<vmem>>, vector<1x8x8x128xf32>
    %58 = vector.shape_cast %56 : vector<128xf32> to vector<1x1x1x128xf32>
    %59 = vector.broadcast %58 : vector<1x1x1x128xf32> to vector<1x8x8x128xf32>
    %60 = arith.mulf %57, %59 : vector<1x8x8x128xf32>
    %61 = arith.addf %54, %60 : vector<1x8x8x128xf32>
    %c5 = arith.constant 5 : index
    %c0_59 = arith.constant 0 : index
    %62 = vector.load %arg4[%c5, %c0_59] : memref<9x128xf32, #tpu.memory_space<vmem>>, vector<1x128xf32>
    %63 = vector.shape_cast %62 : vector<1x128xf32> to vector<128xf32>
    %c0_60 = arith.constant 0 : index
    %c1_61 = arith.constant 1 : index
    %c2_62 = arith.constant 2 : index
    %c0_63 = arith.constant 0 : index
    %64 = vector.load %arg8[%c0_60, %c1_61, %c2_62, %c0_63] : memref<1x10x10x128xf32, #tpu.memory_space<vmem>>, vector<1x8x8x128xf32>
    %65 = vector.shape_cast %63 : vector<128xf32> to vector<1x1x1x128xf32>
    %66 = vector.broadcast %65 : vector<1x1x1x128xf32> to vector<1x8x8x128xf32>
    %67 = arith.mulf %64, %66 : vector<1x8x8x128xf32>
    %68 = arith.addf %61, %67 : vector<1x8x8x128xf32>
    %c6 = arith.constant 6 : index
    %c0_64 = arith.constant 0 : index
    %69 = vector.load %arg4[%c6, %c0_64] : memref<9x128xf32, #tpu.memory_space<vmem>>, vector<1x128xf32>
    %70 = vector.shape_cast %69 : vector<1x128xf32> to vector<128xf32>
    %c0_65 = arith.constant 0 : index
    %c2_66 = arith.constant 2 : index
    %c0_67 = arith.constant 0 : index
    %c0_68 = arith.constant 0 : index
    %71 = vector.load %arg8[%c0_65, %c2_66, %c0_67, %c0_68] : memref<1x10x10x128xf32, #tpu.memory_space<vmem>>, vector<1x8x8x128xf32>
    %72 = vector.shape_cast %70 : vector<128xf32> to vector<1x1x1x128xf32>
    %73 = vector.broadcast %72 : vector<1x1x1x128xf32> to vector<1x8x8x128xf32>
    %74 = arith.mulf %71, %73 : vector<1x8x8x128xf32>
    %75 = arith.addf %68, %74 : vector<1x8x8x128xf32>
    %c7 = arith.constant 7 : index
    %c0_69 = arith.constant 0 : index
    %76 = vector.load %arg4[%c7, %c0_69] : memref<9x128xf32, #tpu.memory_space<vmem>>, vector<1x128xf32>
    %77 = vector.shape_cast %76 : vector<1x128xf32> to vector<128xf32>
    %c0_70 = arith.constant 0 : index
    %c2_71 = arith.constant 2 : index
    %c1_72 = arith.constant 1 : index
    %c0_73 = arith.constant 0 : index
    %78 = vector.load %arg8[%c0_70, %c2_71, %c1_72, %c0_73] : memref<1x10x10x128xf32, #tpu.memory_space<vmem>>, vector<1x8x8x128xf32>
    %79 = vector.shape_cast %77 : vector<128xf32> to vector<1x1x1x128xf32>
    %80 = vector.broadcast %79 : vector<1x1x1x128xf32> to vector<1x8x8x128xf32>
    %81 = arith.mulf %78, %80 : vector<1x8x8x128xf32>
    %82 = arith.addf %75, %81 : vector<1x8x8x128xf32>
    %c8 = arith.constant 8 : index
    %c0_74 = arith.constant 0 : index
    %83 = vector.load %arg4[%c8, %c0_74] : memref<9x128xf32, #tpu.memory_space<vmem>>, vector<1x128xf32>
    %84 = vector.shape_cast %83 : vector<1x128xf32> to vector<128xf32>
    %c0_75 = arith.constant 0 : index
    %c2_76 = arith.constant 2 : index
    %c2_77 = arith.constant 2 : index
    %c0_78 = arith.constant 0 : index
    %85 = vector.load %arg8[%c0_75, %c2_76, %c2_77, %c0_78] : memref<1x10x10x128xf32, #tpu.memory_space<vmem>>, vector<1x8x8x128xf32>
    %86 = vector.shape_cast %84 : vector<128xf32> to vector<1x1x1x128xf32>
    %87 = vector.broadcast %86 : vector<1x1x1x128xf32> to vector<1x8x8x128xf32>
    %88 = arith.mulf %85, %87 : vector<1x8x8x128xf32>
    %89 = arith.addf %82, %88 : vector<1x8x8x128xf32>
    %c0_79 = arith.constant 0 : index
    %c0_80 = arith.constant 0 : index
    %90 = vector.load %arg5[%c0_79, %c0_80] : memref<1x128xf32, #tpu.memory_space<vmem>>, vector<1x128xf32>
    %91 = vector.shape_cast %90 : vector<1x128xf32> to vector<1x1x1x128xf32>
    %92 = vector.broadcast %91 : vector<1x1x1x128xf32> to vector<1x8x8x128xf32>
    %93 = arith.addf %89, %92 : vector<1x8x8x128xf32>
    %c0_81 = arith.constant 0 : index
    %c0_82 = arith.constant 0 : index
    %c0_83 = arith.constant 0 : index
    %c0_84 = arith.constant 0 : index
    %94 = vector.load %arg6[%c0_81, %c0_82, %c0_83, %c0_84] : memref<1x8x8x128xf32, #tpu.memory_space<vmem>>, vector<1x8x8x128xf32>
    tpu.vector_store %arg6[%c0_81, %c0_82, %c0_83, %c0_84], %93 {strides = array<i32>} : memref<1x8x8x128xf32, #tpu.memory_space<vmem>>, vector<1x8x8x128xf32>,
    %95 = vector.shape_cast %93 : vector<1x8x8x128xf32> to vector<64x128xf32>
    %cst_85 = arith.constant dense<0.000000e+00> : vector<128xf32>
    %96 = vector.multi_reduction <add>, %95, %cst_85 [0] : vector<64x128xf32> to vector<128xf32>
    %97 = vector.shape_cast %96 : vector<128xf32> to vector<1x128xf32>
    %c0_86 = arith.constant 0 : index
    %c0_87 = arith.constant 0 : index
    %c0_88 = arith.constant 0 : index
    %98 = vector.load %arg7[%c0_86, %c0_87, %c0_88] : memref<1x2x128xf32, #tpu.memory_space<vmem>>, vector<1x1x128xf32>
    %99 = vector.shape_cast %98 : vector<1x1x128xf32> to vector<1x128xf32>
    %100 = vector.shape_cast %97 : vector<1x128xf32> to vector<1x1x128xf32>
    tpu.vector_store %arg7[%c0_86, %c0_87, %c0_88], %100 {strides = array<i32>} : memref<1x2x128xf32, #tpu.memory_space<vmem>>, vector<1x1x128xf32>,
    %101 = arith.mulf %95, %95 : vector<64x128xf32>
    %cst_89 = arith.constant dense<0.000000e+00> : vector<128xf32>
    %102 = vector.multi_reduction <add>, %101, %cst_89 [0] : vector<64x128xf32> to vector<128xf32>
    %103 = vector.shape_cast %102 : vector<128xf32> to vector<1x128xf32>
    %c0_90 = arith.constant 0 : index
    %c1_91 = arith.constant 1 : index
    %c0_92 = arith.constant 0 : index
    %104 = vector.load %arg7[%c0_90, %c1_91, %c0_92] : memref<1x2x128xf32, #tpu.memory_space<vmem>>, vector<1x1x128xf32>
    %105 = vector.shape_cast %104 : vector<1x1x128xf32> to vector<1x128xf32>
    %106 = vector.shape_cast %103 : vector<1x128xf32> to vector<1x1x128xf32>
    tpu.vector_store %arg7[%c0_90, %c1_91, %c0_92], %106 {strides = array<i32>} : memref<1x2x128xf32, #tpu.memory_space<vmem>>, vector<1x1x128xf32>,
    return
  }
  func.func @transform_0(%arg0: i32) -> (i32, i32, i32, i32) {
    %c0_i32 = arith.constant 0 : i32
    %c0_i32_0 = arith.constant 0 : i32
    %c0_i32_1 = arith.constant 0 : i32
    %c0_i32_2 = arith.constant 0 : i32
    return %arg0, %c0_i32, %c0_i32_0, %c0_i32_1 : i32, i32, i32, i32
  }
  func.func @transform_1(%arg0: i32) -> (i32, i32) {
    %c0_i32 = arith.constant 0 : i32
    %c0_i32_0 = arith.constant 0 : i32
    %c0_i32_1 = arith.constant 0 : i32
    return %c0_i32, %c0_i32_0 : i32, i32
  }
  func.func @transform_2(%arg0: i32) -> (i32, i32) {
    %c0_i32 = arith.constant 0 : i32
    %c0_i32_0 = arith.constant 0 : i32
    %c0_i32_1 = arith.constant 0 : i32
    return %c0_i32, %c0_i32_0 : i32, i32
  }
  func.func @transform_3(%arg0: i32) -> (i32, i32) {
    %c0_i32 = arith.constant 0 : i32
    %c0_i32_0 = arith.constant 0 : i32
    %c0_i32_1 = arith.constant 0 : i32
    return %c0_i32, %c0_i32_0 : i32, i32
  }
  func.func @transform_4(%arg0: i32) -> (i32, i32) {
    %c0_i32 = arith.constant 0 : i32
    %c0_i32_0 = arith.constant 0 : i32
    %c0_i32_1 = arith.constant 0 : i32
    return %c0_i32, %c0_i32_0 : i32, i32
  }
  func.func @transform_5(%arg0: i32) -> (i32, i32, i32, i32) {
    %c0_i32 = arith.constant 0 : i32
    %c0_i32_0 = arith.constant 0 : i32
    %c0_i32_1 = arith.constant 0 : i32
    %c0_i32_2 = arith.constant 0 : i32
    return %arg0, %c0_i32, %c0_i32_0, %c0_i32_1 : i32, i32, i32, i32
  }
  func.func @transform_6(%arg0: i32) -> (i32, i32, i32) {
    %c0_i32 = arith.constant 0 : i32
    %c0_i32_0 = arith.constant 0 : i32
    %c0_i32_1 = arith.constant 0 : i32
    return %arg0, %c0_i32, %c0_i32_0 : i32, i32, i32
  }
}

module attributes {stable_mosaic.version = 11 : i64} {
  func.func @_fc3_kernel(%arg0: i32, %arg1: memref<128x128xf32, #tpu.memory_space<vmem>>, %arg2: memref<1x128xf32, #tpu.memory_space<vmem>>, %arg3: memref<1x128xf32, #tpu.memory_space<vmem>>, %arg4: memref<128x128xf32, #tpu.memory_space<vmem>>, %arg5: memref<1x128xf32, #tpu.memory_space<vmem>>, %arg6: memref<128x128xf32, #tpu.memory_space<vmem>>) attributes {dimension_semantics = [#tpu.dimension_semantics<parallel>], iteration_bounds = array<i64: 1>, scalar_prefetch = 0 : i64, scratch_operands = 0 : i64, tpu.core_type = #tpu.core_type<tc>, window_params = [{transform_indices = @transform_0, window_bounds = array<i64: 128, 128>}, {pipeline_mode = #tpu.pipeline_mode<synchronous>, transform_indices = @transform_1, window_bounds = array<i64: 1, 128>}, {pipeline_mode = #tpu.pipeline_mode<synchronous>, transform_indices = @transform_2, window_bounds = array<i64: 1, 128>}, {pipeline_mode = #tpu.pipeline_mode<synchronous>, transform_indices = @transform_3, window_bounds = array<i64: 128, 128>}, {pipeline_mode = #tpu.pipeline_mode<synchronous>, transform_indices = @transform_4, window_bounds = array<i64: 1, 128>}, {transform_indices = @transform_5, window_bounds = array<i64: 128, 128>}]} {
    %c0 = arith.constant 0 : index
    %c0_0 = arith.constant 0 : index
    %0 = vector.load %arg1[%c0, %c0_0] : memref<128x128xf32, #tpu.memory_space<vmem>>, vector<128x128xf32>
    %c0_1 = arith.constant 0 : index
    %c0_2 = arith.constant 0 : index
    %1 = vector.load %arg2[%c0_1, %c0_2] : memref<1x128xf32, #tpu.memory_space<vmem>>, vector<1x128xf32>
    %2 = vector.broadcast %1 : vector<1x128xf32> to vector<128x128xf32>
    %3 = arith.mulf %0, %2 : vector<128x128xf32>
    %c0_3 = arith.constant 0 : index
    %c0_4 = arith.constant 0 : index
    %4 = vector.load %arg3[%c0_3, %c0_4] : memref<1x128xf32, #tpu.memory_space<vmem>>, vector<1x128xf32>
    %5 = vector.broadcast %4 : vector<1x128xf32> to vector<128x128xf32>
    %6 = arith.addf %3, %5 : vector<128x128xf32>
    %cst = arith.constant 5.000000e-01 : f32
    %7 = vector.broadcast %cst : f32 to vector<128x128xf32>
    %8 = arith.mulf %7, %6 : vector<128x128xf32>
    %cst_5 = arith.constant 0.707106769 : f32
    %9 = vector.broadcast %cst_5 : f32 to vector<128x128xf32>
    %10 = arith.mulf %6, %9 : vector<128x128xf32>
    %11 = math.erf %10 : vector<128x128xf32>
    %cst_6 = arith.constant 1.000000e+00 : f32
    %12 = vector.broadcast %cst_6 : f32 to vector<128x128xf32>
    %13 = arith.addf %12, %11 : vector<128x128xf32>
    %14 = arith.mulf %8, %13 : vector<128x128xf32>
    %c0_7 = arith.constant 0 : index
    %c0_8 = arith.constant 0 : index
    %15 = vector.load %arg4[%c0_7, %c0_8] : memref<128x128xf32, #tpu.memory_space<vmem>>, vector<128x128xf32>
    %cst_9 = arith.constant dense<0.000000e+00> : vector<128x128xf32>
    %16 = tpu.matmul %14, %15, %cst_9 {dimension_numbers = #tpu.dot_dimension_numbers<[1], [0], [0], [1], [0, 0, 1, 1], [], []>} : vector<128x128xf32>, vector<128x128xf32>, vector<128x128xf32> -> vector<128x128xf32>
    %c0_10 = arith.constant 0 : index
    %c0_11 = arith.constant 0 : index
    %17 = vector.load %arg5[%c0_10, %c0_11] : memref<1x128xf32, #tpu.memory_space<vmem>>, vector<1x128xf32>
    %18 = vector.broadcast %17 : vector<1x128xf32> to vector<128x128xf32>
    %19 = arith.addf %16, %18 : vector<128x128xf32>
    %c0_12 = arith.constant 0 : index
    %c0_13 = arith.constant 0 : index
    %20 = vector.load %arg6[%c0_12, %c0_13] : memref<128x128xf32, #tpu.memory_space<vmem>>, vector<128x128xf32>
    tpu.vector_store %arg6[%c0_12, %c0_13], %19 {strides = array<i32>} : memref<128x128xf32, #tpu.memory_space<vmem>>, vector<128x128xf32>,
    return
  }
  func.func @transform_0(%arg0: i32) -> (i32, i32) {
    %c0_i32 = arith.constant 0 : i32
    %c0_i32_0 = arith.constant 0 : i32
    return %arg0, %c0_i32 : i32, i32
  }
  func.func @transform_1(%arg0: i32) -> (i32, i32) {
    %c0_i32 = arith.constant 0 : i32
    %c0_i32_0 = arith.constant 0 : i32
    %c0_i32_1 = arith.constant 0 : i32
    return %c0_i32, %c0_i32_0 : i32, i32
  }
  func.func @transform_2(%arg0: i32) -> (i32, i32) {
    %c0_i32 = arith.constant 0 : i32
    %c0_i32_0 = arith.constant 0 : i32
    %c0_i32_1 = arith.constant 0 : i32
    return %c0_i32, %c0_i32_0 : i32, i32
  }
  func.func @transform_3(%arg0: i32) -> (i32, i32) {
    %c0_i32 = arith.constant 0 : i32
    %c0_i32_0 = arith.constant 0 : i32
    %c0_i32_1 = arith.constant 0 : i32
    return %c0_i32, %c0_i32_0 : i32, i32
  }
  func.func @transform_4(%arg0: i32) -> (i32, i32) {
    %c0_i32 = arith.constant 0 : i32
    %c0_i32_0 = arith.constant 0 : i32
    %c0_i32_1 = arith.constant 0 : i32
    return %c0_i32, %c0_i32_0 : i32, i32
  }
  func.func @transform_5(%arg0: i32) -> (i32, i32) {
    %c0_i32 = arith.constant 0 : i32
    %c0_i32_0 = arith.constant 0 : i32
    return %arg0, %c0_i32 : i32, i32
  }
}

</mosaic_0001>

<llo_original>
// kernel: _lambda_.3
$region0: #{_lambda_.3}
  #allocation0 [shape = 'u32[]', space=smem, size = 0x4, offset = 0x4, fixed_abs, tag = 'smem constant byte address 0x4 - core index']
  #allocation1 [shape = 'u32[144,128]{1,0:T(1,128)}', space=vmem, size = 0x12000, scoped, tag = 'internal scratch']
  %s0 = inlined_call_operand.vmem [shape: f32[128,128], index: 0, kind: input, shape index: {}]
  %s1 = inlined_call_operand.vmem [shape: f32[128,128], index: 1, kind: input, shape index: {}]
  %s2 = inlined_call_operand.vmem [shape: f32[1,128], index: 2, kind: input, shape index: {}]
  %s3 = inlined_call_operand.vmem [shape: f32[128,128], index: 3, kind: output, shape index: {0}]
  %s4 = inlined_call_operand.vmem [shape: f32[1,2,128], index: 4, kind: output, shape index: {1}]
  %5 = xla_tuple %s3, %s4
  %s6 = sld [smem:[#allocation0]]
  $region30: #{_lambda_.3} parent=0
    _
  %s8 = ssub.s32 1, %s6
  %s9 = scalar_select 0, %s8, %s6
  // Predicated region
  $region2: #{_lambda_.3} parent=0 // pred_check
    _
  $region3: #{_lambda_.3} parent=0 // pred_check_branch
    %11 = sbr.rel (0) target = $region5
  $region4: #{_lambda_.3} parent=0 // pred_region
    _
  $region5: #{_lambda_.3} parent=0 // pred_fallthru
    _
  // Predicated region
  $region6: #{_lambda_.3} parent=0 // pred_check
    _
  $region7: #{_lambda_.3} parent=0 // pred_check_branch
    %13 = sbr.rel (0) target = $region9
  $region8: #{_lambda_.3} parent=0 // pred_region
    _
  $region9: #{_lambda_.3} parent=0 // pred_fallthru
    _
  // Predicated region
  $region10: #{_lambda_.3} parent=0 // pred_check
    _
  $region11: #{_lambda_.3} parent=0 // pred_check_branch
    %15 = sbr.rel (0) target = $region13
  $region12: #{_lambda_.3} parent=0 // pred_region
    _
  $region13: #{_lambda_.3} parent=0 // pred_fallthru
    _
  %v16 = vld [vmem:[%s0] sm:$0xff]
  %v17 = vld [vmem:[%s0 + $0x8] sm:$0xff]
  %v18 = vld [vmem:[%s0 + $0x10] sm:$0xff]
  %v19 = vld [vmem:[%s0 + $0x18] sm:$0xff]
  %v20 = vld [vmem:[%s0 + $0x20] sm:$0xff]
  %v21 = vld [vmem:[%s0 + $0x28] sm:$0xff]
  %v22 = vld [vmem:[%s0 + $0x30] sm:$0xff]
  %v23 = vld [vmem:[%s0 + $0x38] sm:$0xff]
  %v24 = vld [vmem:[%s0 + $0x40] sm:$0xff]
  %v25 = vld [vmem:[%s0 + $0x48] sm:$0xff]
  %v26 = vld [vmem:[%s0 + $0x50] sm:$0xff]
  %v27 = vld [vmem:[%s0 + $0x58] sm:$0xff]
  %v28 = vld [vmem:[%s0 + $0x60] sm:$0xff]
  %v29 = vld [vmem:[%s0 + $0x68] sm:$0xff]
  %v30 = vld [vmem:[%s0 + $0x70] sm:$0xff]
  %v31 = vld [vmem:[%s0 + $0x78] sm:$0xff]
  %v32 = vld [vmem:[%s1] sm:$0xff]
  %v33 = vld [vmem:[%s1 + $0x8] sm:$0xff]
  %v34 = vld [vmem:[%s1 + $0x10] sm:$0xff]
  %v35 = vld [vmem:[%s1 + $0x18] sm:$0xff]
  %v36 = vld [vmem:[%s1 + $0x20] sm:$0xff]
  %v37 = vld [vmem:[%s1 + $0x28] sm:$0xff]
  %v38 = vld [vmem:[%s1 + $0x30] sm:$0xff]
  %v39 = vld [vmem:[%s1 + $0x38] sm:$0xff]
  %v40 = vld [vmem:[%s1 + $0x40] sm:$0xff]
  %v41 = vld [vmem:[%s1 + $0x48] sm:$0xff]
  %v42 = vld [vmem:[%s1 + $0x50] sm:$0xff]
  %v43 = vld [vmem:[%s1 + $0x58] sm:$0xff]
  %v44 = vld [vmem:[%s1 + $0x60] sm:$0xff]
  %v45 = vld [vmem:[%s1 + $0x68] sm:$0xff]
  %v46 = vld [vmem:[%s1 + $0x70] sm:$0xff]
  %v47 = vld [vmem:[%s1 + $0x78] sm:$0xff]
  %v48 = vld [vmem:[%s2] sm:$0x1]
  %v50 = vlaneseq
  %v51 = vshrl.u32 %v50, 7
  %v52 = vsub.s32 0, %v51
  %v53 = vrot.slane %v48, %v52
  %55 = vmatprep.subr.mxu0 0.0
  %56 = vmatpush1.msra.mxu0 %v32
  %57 = vmatprep.subr.mxu0 0.0
  %58 = vmatpush1.msra.mxu0 %v33
  %59 = vmatprep.subr.mxu0 0.0
  %60 = vmatpush1.msra.mxu0 %v34
  %61 = vmatprep.subr.mxu0 0.0
  %62 = vmatpush1.msra.mxu0 %v35
  %63 = vmatprep.subr.mxu0 0.0
  %64 = vmatpush1.msra.mxu0 %v36
  %65 = vmatprep.subr.mxu0 0.0
  %66 = vmatpush1.msra.mxu0 %v37
  %67 = vmatprep.subr.mxu0 0.0
  %68 = vmatpush1.msra.mxu0 %v38
  %69 = vmatprep.subr.mxu0 0.0
  %70 = vmatpush1.msra.mxu0 %v39
  %71 = vmatprep.subr.mxu0 0.0
  %72 = vmatpush1.msra.mxu0 %v40
  %73 = vmatprep.subr.mxu0 0.0
  %74 = vmatpush1.msra.mxu0 %v41
  %75 = vmatprep.subr.mxu0 0.0
  %76 = vmatpush1.msra.mxu0 %v42
  %77 = vmatprep.subr.mxu0 0.0
  %78 = vmatpush1.msra.mxu0 %v43
  %79 = vmatprep.subr.mxu0 0.0
  %80 = vmatpush1.msra.mxu0 %v44
  %81 = vmatprep.subr.mxu0 0.0
  %82 = vmatpush1.msra.mxu0 %v45
  %83 = vmatprep.subr.mxu0 0.0
  %84 = vmatpush1.msra.mxu0 %v46
  %85 = vmatprep.subr.mxu0 0.0
  %86 = vmatpush1.msra.mxu0 %v47
  %87 = vmatprep.subr.mxu0 0.0
  %88 = vmatpush1.msra.mxu0 0.0
  %89 = vmatprep.subr.mxu0 0.0
  %90 = vmatpush1.msra.mxu0 0.0
  %91 = vmatprep.subr.mxu0 0.0
  %92 = vmatpush1.msra.mxu0 0.0
  %93 = vmatprep.subr.mxu0 0.0
  %94 = vmatpush1.msra.mxu0 0.0
  %95 = vmatprep.subr.mxu0 0.0
  %96 = vmatpush1.msra.mxu0 0.0
  %97 = vmatprep.subr.mxu0 0.0
  %98 = vmatpush1.msra.mxu0 0.0
  %99 = vmatprep.subr.mxu0 0.0
  %100 = vmatpush1.msra.mxu0 0.0
  %101 = vmatprep.subr.mxu0 0.0
  %102 = vmatpush1.msra.mxu0 0.0
  %103 = vmatprep.subr.mxu0 0.0
  %104 = vmatpush1.msra.mxu0 0.0
  %105 = vmatprep.subr.mxu0 0.0
  %106 = vmatpush1.msra.mxu0 0.0
  %107 = vmatprep.subr.mxu0 0.0
  %108 = vmatpush1.msra.mxu0 0.0
  %109 = vmatprep.subr.mxu0 0.0
  %110 = vmatpush1.msra.mxu0 0.0
  %111 = vmatprep.subr.mxu0 0.0
  %112 = vmatpush1.msra.mxu0 0.0
  %113 = vmatprep.subr.mxu0 0.0
  %114 = vmatpush1.msra.mxu0 0.0
  %115 = vmatprep.subr.mxu0 0.0
  %116 = vmatpush1.msra.mxu0 0.0
  %117 = vmatprep.subr.mxu0 0.0
  %118 = vmatpush1.msra.mxu0 0.0
  %119 = vmatprep.mubr.f32.mxu0 0.0
  %120 = vmatmul.mubr.f32.gmra.mrb[0].mxu0 %v16
  %v121 = vpop.f32.mrb[0].mxu0
  %v122 = vadd.f32 %v53, %v121
  %v123 = vpop.f32.mrb[0].mxu0
  %124 = vmatprep.mubr.f32.mxu0 0.0
  %125 = vmatmul.mubr.f32.gmra.mrb[0].mxu0 %v17
  %v126 = vpop.f32.mrb[0].mxu0
  %v127 = vadd.f32 %v53, %v126
  %v128 = vpop.f32.mrb[0].mxu0
  %129 = vmatprep.mubr.f32.mxu0 0.0
  %130 = vmatmul.mubr.f32.gmra.mrb[0].mxu0 %v18
  %v131 = vpop.f32.mrb[0].mxu0
  %v132 = vadd.f32 %v53, %v131
  %v133 = vpop.f32.mrb[0].mxu0
  %134 = vmatprep.mubr.f32.mxu0 0.0
  %135 = vmatmul.mubr.f32.gmra.mrb[0].mxu0 %v19
  %v136 = vpop.f32.mrb[0].mxu0
  %v137 = vadd.f32 %v53, %v136
  %v138 = vpop.f32.mrb[0].mxu0
  %139 = vmatprep.mubr.f32.mxu0 0.0
  %140 = vmatmul.mubr.f32.gmra.mrb[0].mxu0 %v20
  %v141 = vpop.f32.mrb[0].mxu0
  %v142 = vadd.f32 %v53, %v141
  %v143 = vpop.f32.mrb[0].mxu0
  %144 = vmatprep.mubr.f32.mxu0 0.0
  %145 = vmatmul.mubr.f32.gmra.mrb[0].mxu0 %v21
  %v146 = vpop.f32.mrb[0].mxu0
  %v147 = vadd.f32 %v53, %v146
  %v148 = vpop.f32.mrb[0].mxu0
  %149 = vmatprep.mubr.f32.mxu0 0.0
  %150 = vmatmul.mubr.f32.gmra.mrb[0].mxu0 %v22
  %v151 = vpop.f32.mrb[0].mxu0
  %v152 = vadd.f32 %v53, %v151
  %v153 = vpop.f32.mrb[0].mxu0
  %154 = vmatprep.mubr.f32.mxu0 0.0
  %155 = vmatmul.mubr.f32.gmra.mrb[0].mxu0 %v23
  %v156 = vpop.f32.mrb[0].mxu0
  %v157 = vadd.f32 %v53, %v156
  %v158 = vpop.f32.mrb[0].mxu0
  %159 = vmatprep.mubr.f32.mxu0 0.0
  %160 = vmatmul.mubr.f32.gmra.mrb[0].mxu0 %v24
  %v161 = vpop.f32.mrb[0].mxu0
  %v162 = vadd.f32 %v53, %v161
  %v163 = vpop.f32.mrb[0].mxu0
  %164 = vmatprep.mubr.f32.mxu0 0.0
  %165 = vmatmul.mubr.f32.gmra.mrb[0].mxu0 %v25
  %v166 = vpop.f32.mrb[0].mxu0
  %v167 = vadd.f32 %v53, %v166
  %v168 = vpop.f32.mrb[0].mxu0
  %169 = vmatprep.mubr.f32.mxu0 0.0
  %170 = vmatmul.mubr.f32.gmra.mrb[0].mxu0 %v26
  %v171 = vpop.f32.mrb[0].mxu0
  %v172 = vadd.f32 %v53, %v171
  %v173 = vpop.f32.mrb[0].mxu0
  %174 = vmatprep.mubr.f32.mxu0 0.0
  %175 = vmatmul.mubr.f32.gmra.mrb[0].mxu0 %v27
  %v176 = vpop.f32.mrb[0].mxu0
  %v177 = vadd.f32 %v53, %v176
  %v178 = vpop.f32.mrb[0].mxu0
  %179 = vmatprep.mubr.f32.mxu0 0.0
  %180 = vmatmul.mubr.f32.gmra.mrb[0].mxu0 %v28
  %v181 = vpop.f32.mrb[0].mxu0
  %v182 = vadd.f32 %v53, %v181
  %v183 = vpop.f32.mrb[0].mxu0
  %184 = vmatprep.mubr.f32.mxu0 0.0
  %185 = vmatmul.mubr.f32.gmra.mrb[0].mxu0 %v29
  %v186 = vpop.f32.mrb[0].mxu0
  %v187 = vadd.f32 %v53, %v186
  %v188 = vpop.f32.mrb[0].mxu0
  %189 = vmatprep.mubr.f32.mxu0 0.0
  %190 = vmatmul.mubr.f32.gmra.mrb[0].mxu0 %v30
  %v191 = vpop.f32.mrb[0].mxu0
  %v192 = vadd.f32 %v53, %v191
  %v193 = vpop.f32.mrb[0].mxu0
  %194 = vmatprep.mubr.f32.mxu0 0.0
  %195 = vmatmul.mubr.f32.gmra.mrb[0].mxu0 %v31
  %v196 = vpop.f32.mrb[0].mxu0
  %v197 = vadd.f32 %v53, %v196
  %v198 = vpop.f32.mrb[0].mxu0
  %199 = vdwg.mxu0
  %v200 = vadd.f32 %v122, %v127
  %v201 = vadd.f32 %v200, %v132
  %v202 = vadd.f32 %v201, %v137
  %v203 = vadd.f32 %v202, %v142
  %v204 = vadd.f32 %v203, %v147
  %v205 = vadd.f32 %v204, %v152
  %v206 = vadd.f32 %v205, %v157
  %v207 = vadd.f32 %v206, %v162
  %v208 = vadd.f32 %v207, %v167
  %v209 = vadd.f32 %v208, %v172
  %v210 = vadd.f32 %v209, %v177
  %v211 = vadd.f32 %v210, %v182
  %v212 = vadd.f32 %v211, %v187
  %v213 = vadd.f32 %v212, %v192
  %v214 = vadd.f32 %v213, %v197
  %v215 = vrot.slane %v214, 4
  %v216 = vadd.f32 %v214, %v215
  %v217 = vrot.slane %v216, 2
  %v218 = vadd.f32 %v216, %v217
  %v219 = vrot.slane %v218, 1
  %v220 = vadd.f32 %v218, %v219
  %221 = vst [vmem:[%s4] sm:$0x1] %v220
  %v222 = vmul.f32 %v122, %v122
  %v223 = vmul.f32 %v127, %v127
  %v224 = vmul.f32 %v132, %v132
  %v225 = vmul.f32 %v137, %v137
  %v226 = vmul.f32 %v142, %v142
  %v227 = vmul.f32 %v147, %v147
  %v228 = vmul.f32 %v152, %v152
  %v229 = vmul.f32 %v157, %v157
  %v230 = vmul.f32 %v162, %v162
  %v231 = vmul.f32 %v167, %v167
  %v232 = vmul.f32 %v172, %v172
  %v233 = vmul.f32 %v177, %v177
  %v234 = vmul.f32 %v182, %v182
  %v235 = vmul.f32 %v187, %v187
  %v236 = vmul.f32 %v192, %v192
  %v237 = vmul.f32 %v197, %v197
  %v238 = vadd.f32 %v222, %v223
  %v239 = vadd.f32 %v238, %v224
  %v240 = vadd.f32 %v239, %v225
  %v241 = vadd.f32 %v240, %v226
  %v242 = vadd.f32 %v241, %v227
  %v243 = vadd.f32 %v242, %v228
  %v244 = vadd.f32 %v243, %v229
  %v245 = vadd.f32 %v244, %v230
  %v246 = vadd.f32 %v245, %v231
  %v247 = vadd.f32 %v246, %v232
  %v248 = vadd.f32 %v247, %v233
  %v249 = vadd.f32 %v248, %v234
  %v250 = vadd.f32 %v249, %v235
  %v251 = vadd.f32 %v250, %v236
  %v252 = vadd.f32 %v251, %v237
  %v253 = vrot.slane %v252, 4
  %v254 = vadd.f32 %v252, %v253
  %v255 = vrot.slane %v254, 2
  %v256 = vadd.f32 %v254, %v255
  %v257 = vrot.slane %v256, 1
  %v258 = vadd.f32 %v256, %v257
  %259 = vst [vmem:[%s4 + $0x1] sm:$0x1] %v258
  %260 = vst [vmem:[%s3] sm:$0xff] %v122
  %261 = vst [vmem:[%s3 + $0x8] sm:$0xff] %v127
  %262 = vst [vmem:[%s3 + $0x10] sm:$0xff] %v132
  %263 = vst [vmem:[%s3 + $0x18] sm:$0xff] %v137
  %264 = vst [vmem:[%s3 + $0x20] sm:$0xff] %v142
  %265 = vst [vmem:[%s3 + $0x28] sm:$0xff] %v147
  %266 = vst [vmem:[%s3 + $0x30] sm:$0xff] %v152
  %267 = vst [vmem:[%s3 + $0x38] sm:$0xff] %v157
  %268 = vst [vmem:[%s3 + $0x40] sm:$0xff] %v162
  %269 = vst [vmem:[%s3 + $0x48] sm:$0xff] %v167
  %270 = vst [vmem:[%s3 + $0x50] sm:$0xff] %v172
  %271 = vst [vmem:[%s3 + $0x58] sm:$0xff] %v177
  %272 = vst [vmem:[%s3 + $0x60] sm:$0xff] %v182
  %273 = vst [vmem:[%s3 + $0x68] sm:$0xff] %v187
  %274 = vst [vmem:[%s3 + $0x70] sm:$0xff] %v192
  %275 = vst [vmem:[%s3 + $0x78] sm:$0xff] %v197
  // Predicated region
  $region14: #{_lambda_.3} parent=0 // pred_check
    _
  $region15: #{_lambda_.3} parent=0 // pred_check_branch
    %277 = sbr.rel (0) target = $region17
  $region16: #{_lambda_.3} parent=0 // pred_region
    _
  $region17: #{_lambda_.3} parent=0 // pred_fallthru
    _
  // Predicated region
  $region18: #{_lambda_.3} parent=0 // pred_check
    _
  $region19: #{_lambda_.3} parent=0 // pred_check_branch
    %279 = sbr.rel (0) target = $region21
  $region20: #{_lambda_.3} parent=0 // pred_region
    _
  $region21: #{_lambda_.3} parent=0 // pred_fallthru
    _
  // Predicated region
  $region22: #{_lambda_.3} parent=0 // pred_check
    _
  $region23: #{_lambda_.3} parent=0 // pred_check_branch
    %281 = sbr.rel (0) target = $region25
  $region24: #{_lambda_.3} parent=0 // pred_region
    _
  $region25: #{_lambda_.3} parent=0 // pred_fallthru
    _
  // Predicated region
  $region26: #{_lambda_.3} parent=0 // pred_check
    _
  $region27: #{_lambda_.3} parent=0 // pred_check_branch
    %283 = sbr.rel (0) target = $region29
  $region28: #{_lambda_.3} parent=0 // pred_region
    _
  $region29: #{_lambda_.3} parent=0 // pred_fallthru
    _

// kernel: _lambda_.4
$region0: #{_lambda_.4}
  #allocation0 [shape = 'u32[]', space=smem, size = 0x4, offset = 0x4, fixed_abs, tag = 'smem constant byte address 0x4 - core index']
  #allocation1 [shape = 'u32[144,128]{1,0:T(1,128)}', space=vmem, size = 0x12000, scoped, tag = 'internal scratch']
  #allocation2 [shape = 'f32[1,10,10,128]{3,2,1,0:T(8,128)}', space=vmem, size = 0x14000, scoped, tag = 'scratch operand']
  %s0 = inlined_call_operand.vmem [shape: f32[2,8,8,128], index: 0, kind: input, shape index: {}]
  %s1 = inlined_call_operand.vmem [shape: f32[1,128], index: 1, kind: input, shape index: {}]
  %s2 = inlined_call_operand.vmem [shape: f32[1,128], index: 2, kind: input, shape index: {}]
  %s3 = inlined_call_operand.vmem [shape: f32[9,128], index: 3, kind: input, shape index: {}]
  %s4 = inlined_call_operand.vmem [shape: f32[1,128], index: 4, kind: input, shape index: {}]
  %s5 = inlined_call_operand.vmem [shape: f32[2,8,8,128], index: 5, kind: output, shape index: {0}]
  %s6 = inlined_call_operand.vmem [shape: f32[2,2,128], index: 6, kind: output, shape index: {1}]
  %7 = xla_tuple %s5, %s6
  %s8 = sld [smem:[#allocation0]]
  $region61: #{_lambda_.4} parent=0
    _
  %s10 = ssub.s32 1, %s8
  %s11 = scalar_select 0, %s10, %s8
  loop: start=0, step=1, limit=4
  $region2: #{_lambda_.4} parent=0 // loop_pre_header
    _
  $region3: #{_lambda_.4} parent=0 // loop_header
    %s13 = sphi 0, %s17
    %p14 = scmp.ge.s32.totalorder %s13, 4
    %s23 = sphi 0, %s25
    %s26 = sphi 0, %s23
    %s27 = sphi 0, %s26
    %s43 = sphi 0, %s27
    %s47 = sphi 0, %s47
    %s49 = sphi 0, %s47
    %s50 = sphi 0, %s49
    %s64 = sphi 0, %s50
    %s68 = sphi 0, %s68
    %s70 = sphi 0, %s68
    %s71 = sphi 0, %s70
    %s85 = sphi 0, %s71
    %s89 = sphi 0, %s89
    %s91 = sphi 0, %s89
    %s92 = sphi 0, %s91
    %s106 = sphi 0, %s92
    %s110 = sphi 0, %s110
    %s112 = sphi 0, %s110
    %s113 = sphi 0, %s112
    %s127 = sphi 0, %s113
    %s133 = sphi 0, %s135
    %s136 = sphi 0, %s133
    %s137 = sphi 0, %s136
    %s153 = sphi 0, %s137
    %s159 = sphi 0, %s161
    %s162 = sphi 0, %s159
    %s163 = sphi 0, %s162
    %s179 = sphi 0, %s163
  $region4: #{_lambda_.4} parent=0 // loop_header_branch
    %16 = sbr.rel (%p14) target = $region8
  $region5: #{_lambda_.4} parent=0 // loop_body
    %s18 = ssub.s32 %s13, 1
    %s19 = ssub.s32 %s13, 2
    %s20 = sadd.s32 %s13, 1
    %s21 = ssub.s32 %s13, %s20
    %p22 = scmp.eq.s32.totalorder %s21, 0
    %s24 = sadd.s32 %s23, 1
    %s25 = scalar_select %p22, %s23, %s24
    %p28 = pneg %p22
    %p29 = scmp.eq.s32.totalorder %s13, 1
    %p30 = por %p28, %p29
    %p31 = scmp.ne.s32.totalorder %s23, %s26
    %p32 = scmp.eq.s32.totalorder %s13, 0
    %p33 = por %p31, %p32
    %p34 = scmp.ne.s32.totalorder %s23, %s26
    %p35 = scmp.eq.s32.totalorder %s18, 1
    %p36 = por %p34, %p35
    %p37 = scmp.ne.s32.totalorder %s26, %s27
    %p38 = scmp.eq.s32.totalorder %s18, 0
    %p39 = por %p37, %p38
    %p40 = scmp.ne.s32.totalorder %s26, %s27
    %p41 = scmp.eq.s32.totalorder %s19, 1
    %p42 = por %p40, %p41
    %p44 = scmp.ne.s32.totalorder %s27, %s43
    %p45 = scmp.eq.s32.totalorder %s19, 0
    %p46 = por %p44, %p45
    %s48 = sadd.s32 %s47, 1
    %p51 = scmp.eq.s32.totalorder %s13, 1
    %p52 = scmp.ne.s32.totalorder %s47, %s49
    %p53 = scmp.eq.s32.totalorder %s13, 0
    %p54 = por %p52, %p53
    %p55 = scmp.ne.s32.totalorder %s47, %s49
    %p56 = scmp.eq.s32.totalorder %s18, 1
    %p57 = por %p55, %p56
    %p58 = scmp.ne.s32.totalorder %s49, %s50
    %p59 = scmp.eq.s32.totalorder %s18, 0
    %p60 = por %p58, %p59
    %p61 = scmp.ne.s32.totalorder %s49, %s50
    %p62 = scmp.eq.s32.totalorder %s19, 1
    %p63 = por %p61, %p62
    %p65 = scmp.ne.s32.totalorder %s50, %s64
    %p66 = scmp.eq.s32.totalorder %s19, 0
    %p67 = por %p65, %p66
    %s69 = sadd.s32 %s68, 1
    %p72 = scmp.eq.s32.totalorder %s13, 1
    %p73 = scmp.ne.s32.totalorder %s68, %s70
    %p74 = scmp.eq.s32.totalorder %s13, 0
    %p75 = por %p73, %p74
    %p76 = scmp.ne.s32.totalorder %s68, %s70
    %p77 = scmp.eq.s32.totalorder %s18, 1
    %p78 = por %p76, %p77
    %p79 = scmp.ne.s32.totalorder %s70, %s71
    %p80 = scmp.eq.s32.totalorder %s18, 0
    %p81 = por %p79, %p80
    %p82 = scmp.ne.s32.totalorder %s70, %s71
    %p83 = scmp.eq.s32.totalorder %s19, 1
    %p84 = por %p82, %p83
    %p86 = scmp.ne.s32.totalorder %s71, %s85
    %p87 = scmp.eq.s32.totalorder %s19, 0
    %p88 = por %p86, %p87
    %s90 = sadd.s32 %s89, 1
    %p93 = scmp.eq.s32.totalorder %s13, 1
    %p94 = scmp.ne.s32.totalorder %s89, %s91
    %p95 = scmp.eq.s32.totalorder %s13, 0
    %p96 = por %p94, %p95
    %p97 = scmp.ne.s32.totalorder %s89, %s91
    %p98 = scmp.eq.s32.totalorder %s18, 1
    %p99 = por %p97, %p98
    %p100 = scmp.ne.s32.totalorder %s91, %s92
    %p101 = scmp.eq.s32.totalorder %s18, 0
    %p102 = por %p100, %p101
    %p103 = scmp.ne.s32.totalorder %s91, %s92
    %p104 = scmp.eq.s32.totalorder %s19, 1
    %p105 = por %p103, %p104
    %p107 = scmp.ne.s32.totalorder %s92, %s106
    %p108 = scmp.eq.s32.totalorder %s19, 0
    %p109 = por %p107, %p108
    %s111 = sadd.s32 %s110, 1
    %p114 = scmp.eq.s32.totalorder %s13, 1
    %p115 = scmp.ne.s32.totalorder %s110, %s112
    %p116 = scmp.eq.s32.totalorder %s13, 0
    %p117 = por %p115, %p116
    %p118 = scmp.ne.s32.totalorder %s110, %s112
    %p119 = scmp.eq.s32.totalorder %s18, 1
    %p120 = por %p118, %p119
    %p121 = scmp.ne.s32.totalorder %s112, %s113
    %p122 = scmp.eq.s32.totalorder %s18, 0
    %p123 = por %p121, %p122
    %p124 = scmp.ne.s32.totalorder %s112, %s113
    %p125 = scmp.eq.s32.totalorder %s19, 1
    %p126 = por %p124, %p125
    %p128 = scmp.ne.s32.totalorder %s113, %s127
    %p129 = scmp.eq.s32.totalorder %s19, 0
    %p130 = por %p128, %p129
    %s131 = ssub.s32 %s13, %s20
    %p132 = scmp.eq.s32.totalorder %s131, 0
    %s134 = sadd.s32 %s133, 1
    %s135 = scalar_select %p132, %s133, %s134
    %p138 = pneg %p132
    %p139 = scmp.eq.s32.totalorder %s13, 1
    %p140 = por %p138, %p139
    %p141 = scmp.ne.s32.totalorder %s133, %s136
    %p142 = scmp.eq.s32.totalorder %s13, 0
    %p143 = por %p141, %p142
    %p144 = scmp.ne.s32.totalorder %s133, %s136
    %p145 = scmp.eq.s32.totalorder %s18, 1
    %p146 = por %p144, %p145
    %p147 = scmp.ne.s32.totalorder %s136, %s137
    %p148 = scmp.eq.s32.totalorder %s18, 0
    %p149 = por %p147, %p148
    %p150 = scmp.ne.s32.totalorder %s136, %s137
    %p151 = scmp.eq.s32.totalorder %s19, 1
    %p152 = por %p150, %p151
    %p154 = scmp.ne.s32.totalorder %s137, %s153
    %p155 = scmp.eq.s32.totalorder %s19, 0
    %p156 = por %p154, %p155
    %s157 = ssub.s32 %s13, %s20
    %p158 = scmp.eq.s32.totalorder %s157, 0
    %s160 = sadd.s32 %s159, 1
    %s161 = scalar_select %p158, %s159, %s160
    %p164 = pneg %p158
    %p165 = scmp.eq.s32.totalorder %s13, 1
    %p166 = por %p164, %p165
    %p167 = scmp.ne.s32.totalorder %s159, %s162
    %p168 = scmp.eq.s32.totalorder %s13, 0
    %p169 = por %p167, %p168
    %p170 = scmp.ne.s32.totalorder %s159, %s162
    %p171 = scmp.eq.s32.totalorder %s18, 1
    %p172 = por %p170, %p171
    %p173 = scmp.ne.s32.totalorder %s162, %s163
    %p174 = scmp.eq.s32.totalorder %s18, 0
    %p175 = por %p173, %p174
    %p176 = scmp.ne.s32.totalorder %s162, %s163
    %p177 = scmp.eq.s32.totalorder %s19, 1
    %p178 = por %p176, %p177
    %p180 = scmp.ne.s32.totalorder %s163, %s179
    %p181 = scmp.eq.s32.totalorder %s19, 0
    %p182 = por %p180, %p181
    %p183 = scmp.le.s32.totalorder 1, %s13
    %p184 = scmp.lt.s32.totalorder %s13, 3
    %p185 = pnand %p183, %p184
    %p186 = pneg %p185
    // Predicated region
    $region9: #{_lambda_.4} parent=5 // pred_check
      _
    $region10: #{_lambda_.4} parent=5 // pred_check_branch
      %188 = sbr.rel (%p185) target = $region12
    $region11: #{_lambda_.4} parent=5 // pred_region
      %s189 = ssub.s32 %s13, 1
      // Predicated region
      $region13: #{_lambda_.4} parent=11 // pred_check
        %p190 = pneg %p60
      $region14: #{_lambda_.4} parent=11 // pred_check_branch
        %192 = sbr.rel (%p190) target = $region16
      $region15: #{_lambda_.4} parent=11 // pred_region
        _
      $region16: #{_lambda_.4} parent=11 // pred_fallthru
        _
      // Predicated region
      $region17: #{_lambda_.4} parent=11 // pred_check
        %p193 = pneg %p81
      $region18: #{_lambda_.4} parent=11 // pred_check_branch
        %195 = sbr.rel (%p193) target = $region20
      $region19: #{_lambda_.4} parent=11 // pred_region
        _
      $region20: #{_lambda_.4} parent=11 // pred_fallthru
        _
      // Predicated region
      $region21: #{_lambda_.4} parent=11 // pred_check
        %p196 = pneg %p102
      $region22: #{_lambda_.4} parent=11 // pred_check_branch
        %198 = sbr.rel (%p196) target = $region24
      $region23: #{_lambda_.4} parent=11 // pred_region
        _
      $region24: #{_lambda_.4} parent=11 // pred_fallthru
        _
      // Predicated region
      $region25: #{_lambda_.4} parent=11 // pred_check
        %p199 = pneg %p123
      $region26: #{_lambda_.4} parent=11 // pred_check_branch
        %201 = sbr.rel (%p199) target = $region28
      $region27: #{_lambda_.4} parent=11 // pred_region
        _
      $region28: #{_lambda_.4} parent=11 // pred_fallthru
        _
    $region12: #{_lambda_.4} parent=5 // pred_fallthru
      _
    %p202 = scmp.lt.s32.totalorder %s13, 2
    // Predicated region
    $region29: #{_lambda_.4} parent=5 // pred_check
      %p203 = pneg %p202
    $region30: #{_lambda_.4} parent=5 // pred_check_branch
      %205 = sbr.rel (%p203) target = $region32
    $region31: #{_lambda_.4} parent=5 // pred_region
      // Predicated region
      $region33: #{_lambda_.4} parent=31 // pred_check
        %p206 = pneg %p33
      $region34: #{_lambda_.4} parent=31 // pred_check_branch
        %208 = sbr.rel (%p206) target = $region36
      $region35: #{_lambda_.4} parent=31 // pred_region
        %p209 = scmp.lt.s32.totalorder %s13, 1
        %s210 = scalar_select %p209, %s13, 1
        %s211 = smul.addr %s210, 8
        %s212 = smul.addr %s211, 8
        %s213 = scalar_lea.vmem %s0, %s212
      $region36: #{_lambda_.4} parent=31 // pred_fallthru
        _
    $region32: #{_lambda_.4} parent=5 // pred_fallthru
      _
    %p214 = scmp.le.s32.totalorder 1, %s13
    %p215 = scmp.lt.s32.totalorder %s13, 3
    %p216 = pnand %p214, %p215
    %p217 = pneg %p216
    // Predicated region
    $region37: #{_lambda_.4} parent=5 // pred_check
      _
    $region38: #{_lambda_.4} parent=5 // pred_check_branch
      %219 = sbr.rel (%p216) target = $region40
    $region39: #{_lambda_.4} parent=5 // pred_region
      %s220 = ssub.s32 %s13, 1
      %p221 = scmp.lt.s32.totalorder %s18, 1
      %s222 = scalar_select %p221, %s18, 1
      %s223 = smul.addr %s222, 8
      %s224 = smul.addr %s223, 8
      %s225 = scalar_lea.vmem %s0, %s224
      %p226 = pneg %p39
      %p227 = pneg %p36
      %p228 = pneg %p60
      %p229 = pneg %p57
      %p230 = pneg %p81
      %p231 = pneg %p78
      %p232 = pneg %p102
      %p233 = pneg %p99
      %p234 = pneg %p123
      %p235 = pneg %p120
      %p236 = pneg %p149
      %p237 = pneg %p146
      %p238 = scmp.lt.s32.totalorder %s18, 1
      %s239 = scalar_select %p238, %s18, 1
      %s240 = smul.addr %s239, 8
      %s241 = smul.addr %s240, 8
      %s242 = scalar_lea.vmem %s5, %s241
      %p243 = pneg %p175
      %p244 = pneg %p172
      %p245 = scmp.lt.s32.totalorder %s18, 1
      %s246 = scalar_select %p245, %s18, 1
      %s247 = smul.addr %s246, 2
      %s248 = scalar_lea.vmem %s6, %s247
      %p249 = scmp.lt.s32.totalorder %s18, 1
      %s250 = scalar_select %p249, %s18, 1
      %s251 = smul.addr %s250, 8
      %s252 = smul.addr %s251, 8
      %s253 = scalar_lea.vmem %s0, %s252
      %p254 = scmp.lt.s32.totalorder %s18, 1
      %s255 = scalar_select %p254, %s18, 1
      %s256 = smul.addr %s255, 8
      %s257 = smul.addr %s256, 8
      %s258 = scalar_lea.vmem %s5, %s257
      %p259 = scmp.lt.s32.totalorder %s18, 1
      %s260 = scalar_select %p259, %s18, 1
      %s261 = smul.addr %s260, 2
      %s262 = scalar_lea.vmem %s6, %s261
      %v263 = vld [vmem:[%s253] sm:$0xff]
      %v264 = vld [vmem:[%s253 + $0x8] sm:$0xff]
      %v265 = vld [vmem:[%s253 + $0x10] sm:$0xff]
      %v266 = vld [vmem:[%s253 + $0x18] sm:$0xff]
      %v267 = vld [vmem:[%s253 + $0x20] sm:$0xff]
      %v268 = vld [vmem:[%s253 + $0x28] sm:$0xff]
      %v269 = vld [vmem:[%s253 + $0x30] sm:$0xff]
      %v270 = vld [vmem:[%s253 + $0x38] sm:$0xff]
      %v271 = vld [vmem:[%s1] sm:$0x1]
      %v273 = vlaneseq
      %v274 = vshrl.u32 %v273, 7
      %v275 = vsub.s32 0, %v274
      %v276 = vrot.slane %v271, %v275
      %v278 = vmul.f32 %v263, %v276
      %v279 = vmul.f32 %v264, %v276
      %v280 = vmul.f32 %v265, %v276
      %v281 = vmul.f32 %v266, %v276
      %v282 = vmul.f32 %v267, %v276
      %v283 = vmul.f32 %v268, %v276
      %v284 = vmul.f32 %v269, %v276
      %v285 = vmul.f32 %v270, %v276
      %v286 = vld [vmem:[%s2] sm:$0x1]
      %v288 = vlaneseq
      %v289 = vshrl.u32 %v288, 7
      %v290 = vsub.s32 0, %v289
      %v291 = vrot.slane %v286, %v290
      %v293 = vadd.f32 %v278, %v291
      %v294 = vadd.f32 %v279, %v291
      %v295 = vadd.f32 %v280, %v291
      %v296 = vadd.f32 %v281, %v291
      %v297 = vadd.f32 %v282, %v291
      %v298 = vadd.f32 %v283, %v291
      %v299 = vadd.f32 %v284, %v291
      %v300 = vadd.f32 %v285, %v291
      %v301 = vmul.f32 %v293, 0.5
      %v302 = vmul.f32 %v294, 0.5
      %v303 = vmul.f32 %v295, 0.5
      %v304 = vmul.f32 %v296, 0.5
      %v305 = vmul.f32 %v297, 0.5
      %v306 = vmul.f32 %v298, 0.5
      %v307 = vmul.f32 %v299, 0.5
      %v308 = vmul.f32 %v300, 0.5
      %v309 = vmul.f32 %v293, 0.70710677
      %v310 = vmul.f32 %v294, 0.70710677
      %v311 = vmul.f32 %v295, 0.70710677
      %v312 = vmul.f32 %v296, 0.70710677
      %v313 = vmul.f32 %v297, 0.70710677
      %v314 = vmul.f32 %v298, 0.70710677
      %v315 = vmul.f32 %v299, 0.70710677
      %v316 = vmul.f32 %v300, 0.70710677
      %v317 = verf.f32.pop %v309
      %v318 = verf.f32.pop %v310
      %v319 = verf.f32.pop %v311
      %v320 = verf.f32.pop %v312
      %v321 = verf.f32.pop %v313
      %v322 = verf.f32.pop %v314
      %v323 = verf.f32.pop %v315
      %v324 = verf.f32.pop %v316
      %v325 = vadd.f32 %v317, 1.0
      %v326 = vadd.f32 %v318, 1.0
      %v327 = vadd.f32 %v319, 1.0
      %v328 = vadd.f32 %v320, 1.0
      %v329 = vadd.f32 %v321, 1.0
      %v330 = vadd.f32 %v322, 1.0
      %v331 = vadd.f32 %v323, 1.0
      %v332 = vadd.f32 %v324, 1.0
      %v333 = vmul.f32 %v301, %v325
      %v334 = vmul.f32 %v302, %v326
      %v335 = vmul.f32 %v303, %v327
      %v336 = vmul.f32 %v304, %v328
      %v337 = vmul.f32 %v305, %v329
      %v338 = vmul.f32 %v306, %v330
      %v339 = vmul.f32 %v307, %v331
      %v340 = vmul.f32 %v308, %v332
      %341 = vst [vmem:[#allocation2] sm:$0xff] 0.0
      %342 = vst [vmem:[#allocation2 + $0x8] sm:$0x3] 0.0
      %s343 = scalar_lea.vmem [#allocation2], 144
      %344 = vst [vmem:[%s343] sm:$0xff] 0.0
      %345 = vst [vmem:[%s343 + $0x8] sm:$0x3] 0.0
      %s346 = scalar_lea.vmem [#allocation2], 16
      %347 = vst [vmem:[%s346] sm:$0x1] 0.0
      %348 = vst [vmem:[%s346 + $0x10] sm:$0x1] 0.0
      %349 = vst [vmem:[%s346 + $0x20] sm:$0x1] 0.0
      %350 = vst [vmem:[%s346 + $0x30] sm:$0x1] 0.0
      %351 = vst [vmem:[%s346 + $0x40] sm:$0x1] 0.0
      %352 = vst [vmem:[%s346 + $0x50] sm:$0x1] 0.0
      %353 = vst [vmem:[%s346 + $0x60] sm:$0x1] 0.0
      %354 = vst [vmem:[%s346 + $0x70] sm:$0x1] 0.0
      %355 = vst [vmem:[%s346 + $0x9] sm:$0x1] 0.0
      %356 = vst [vmem:[%s346 + $0x19] sm:$0x1] 0.0
      %357 = vst [vmem:[%s346 + $0x29] sm:$0x1] 0.0
      %358 = vst [vmem:[%s346 + $0x39] sm:$0x1] 0.0
      %359 = vst [vmem:[%s346 + $0x49] sm:$0x1] 0.0
      %360 = vst [vmem:[%s346 + $0x59] sm:$0x1] 0.0
      %361 = vst [vmem:[%s346 + $0x69] sm:$0x1] 0.0
      %362 = vst [vmem:[%s346 + $0x79] sm:$0x1] 0.0
      %363 = vst [vmem:[%s346 + $0x1] sm:$0xff] %v333
      %364 = vst [vmem:[%s346 + $0x11] sm:$0xff] %v334
      %365 = vst [vmem:[%s346 + $0x21] sm:$0xff] %v335
      %366 = vst [vmem:[%s346 + $0x31] sm:$0xff] %v336
      %367 = vst [vmem:[%s346 + $0x41] sm:$0xff] %v337
      %368 = vst [vmem:[%s346 + $0x51] sm:$0xff] %v338
      %369 = vst [vmem:[%s346 + $0x61] sm:$0xff] %v339
      %370 = vst [vmem:[%s346 + $0x71] sm:$0xff] %v340
      %v371 = vld [vmem:[%s3] sm:$0x1]
      %v372 = vld [vmem:[#allocation2] sm:$0xff]
      %v373 = vld [vmem:[#allocation2 + $0x10] sm:$0xff]
      %v374 = vld [vmem:[#allocation2 + $0x20] sm:$0xff]
      %v375 = vld [vmem:[#allocation2 + $0x30] sm:$0xff]
      %v376 = vld [vmem:[#allocation2 + $0x40] sm:$0xff]
      %v377 = vld [vmem:[#allocation2 + $0x50] sm:$0xff]
      %v378 = vld [vmem:[#allocation2 + $0x60] sm:$0xff]
      %v379 = vld [vmem:[#allocation2 + $0x70] sm:$0xff]
      %v380 = vlaneseq
      %v381 = vshrl.u32 %v380, 7
      %v382 = vsub.s32 0, %v381
      %v383 = vrot.slane %v371, %v382
      %v384 = vmul.f32 %v372, %v383
      %v385 = vmul.f32 %v373, %v383
      %v386 = vmul.f32 %v374, %v383
      %v387 = vmul.f32 %v375, %v383
      %v388 = vmul.f32 %v376, %v383
      %v389 = vmul.f32 %v377, %v383
      %v390 = vmul.f32 %v378, %v383
      %v391 = vmul.f32 %v379, %v383
      %v392 = vadd.f32 %v384, 0.0
      %v393 = vadd.f32 %v385, 0.0
      %v394 = vadd.f32 %v386, 0.0
      %v395 = vadd.f32 %v387, 0.0
      %v396 = vadd.f32 %v388, 0.0
      %v397 = vadd.f32 %v389, 0.0
      %v398 = vadd.f32 %v390, 0.0
      %v399 = vadd.f32 %v391, 0.0
      %v400 = vld [vmem:[%s3 + $0x1] sm:$0x1]
      %v401 = vld [vmem:[#allocation2 + $0x1] sm:$0xff]
      %v402 = vld [vmem:[#allocation2 + $0x11] sm:$0xff]
      %v403 = vld [vmem:[#allocation2 + $0x21] sm:$0xff]
      %v404 = vld [vmem:[#allocation2 + $0x31] sm:$0xff]
      %v405 = vld [vmem:[#allocation2 + $0x41] sm:$0xff]
      %v406 = vld [vmem:[#allocation2 + $0x51] sm:$0xff]
      %v407 = vld [vmem:[#allocation2 + $0x61] sm:$0xff]
      %v408 = vld [vmem:[#allocation2 + $0x71] sm:$0xff]
      %v409 = vlaneseq
      %v410 = vshrl.u32 %v409, 7
      %v411 = vsub.s32 0, %v410
      %v412 = vrot.slane %v400, %v411
      %v413 = vmul.f32 %v401, %v412
      %v414 = vmul.f32 %v402, %v412
      %v415 = vmul.f32 %v403, %v412
      %v416 = vmul.f32 %v404, %v412
      %v417 = vmul.f32 %v405, %v412
      %v418 = vmul.f32 %v406, %v412
      %v419 = vmul.f32 %v407, %v412
      %v420 = vmul.f32 %v408, %v412
      %v421 = vadd.f32 %v392, %v413
      %v422 = vadd.f32 %v393, %v414
      %v423 = vadd.f32 %v394, %v415
      %v424 = vadd.f32 %v395, %v416
      %v425 = vadd.f32 %v396, %v417
      %v426 = vadd.f32 %v397, %v418
      %v427 = vadd.f32 %v398, %v419
      %v428 = vadd.f32 %v399, %v420
      %v429 = vld [vmem:[%s3 + $0x2] sm:$0x1]
      %v430 = vld [vmem:[#allocation2 + $0x2] sm:$0xff]
      %v431 = vld [vmem:[#allocation2 + $0x12] sm:$0xff]
      %v432 = vld [vmem:[#allocation2 + $0x22] sm:$0xff]
      %v433 = vld [vmem:[#allocation2 + $0x32] sm:$0xff]
      %v434 = vld [vmem:[#allocation2 + $0x42] sm:$0xff]
      %v435 = vld [vmem:[#allocation2 + $0x52] sm:$0xff]
      %v436 = vld [vmem:[#allocation2 + $0x62] sm:$0xff]
      %v437 = vld [vmem:[#allocation2 + $0x72] sm:$0xff]
      %v438 = vlaneseq
      %v439 = vshrl.u32 %v438, 7
      %v440 = vsub.s32 0, %v439
      %v441 = vrot.slane %v429, %v440
      %v442 = vmul.f32 %v430, %v441
      %v443 = vmul.f32 %v431, %v441
      %v444 = vmul.f32 %v432, %v441
      %v445 = vmul.f32 %v433, %v441
      %v446 = vmul.f32 %v434, %v441
      %v447 = vmul.f32 %v435, %v441
      %v448 = vmul.f32 %v436, %v441
      %v449 = vmul.f32 %v437, %v441
      %v450 = vadd.f32 %v421, %v442
      %v451 = vadd.f32 %v422, %v443
      %v452 = vadd.f32 %v423, %v444
      %v453 = vadd.f32 %v424, %v445
      %v454 = vadd.f32 %v425, %v446
      %v455 = vadd.f32 %v426, %v447
      %v456 = vadd.f32 %v427, %v448
      %v457 = vadd.f32 %v428, %v449
      %v458 = vld [vmem:[%s3 + $0x3] sm:$0x1]
      %v459 = vld [vmem:[%s346] sm:$0xff]
      %v460 = vld [vmem:[%s346 + $0x10] sm:$0xff]
      %v461 = vld [vmem:[%s346 + $0x20] sm:$0xff]
      %v462 = vld [vmem:[%s346 + $0x30] sm:$0xff]
      %v463 = vld [vmem:[%s346 + $0x40] sm:$0xff]
      %v464 = vld [vmem:[%s346 + $0x50] sm:$0xff]
      %v465 = vld [vmem:[%s346 + $0x60] sm:$0xff]
      %v466 = vld [vmem:[%s346 + $0x70] sm:$0xff]
      %v467 = vlaneseq
      %v468 = vshrl.u32 %v467, 7
      %v469 = vsub.s32 0, %v468
      %v470 = vrot.slane %v458, %v469
      %v471 = vmul.f32 %v459, %v470
      %v472 = vmul.f32 %v460, %v470
      %v473 = vmul.f32 %v461, %v470
      %v474 = vmul.f32 %v462, %v470
      %v475 = vmul.f32 %v463, %v470
      %v476 = vmul.f32 %v464, %v470
      %v477 = vmul.f32 %v465, %v470
      %v478 = vmul.f32 %v466, %v470
      %v479 = vadd.f32 %v450, %v471
      %v480 = vadd.f32 %v451, %v472
      %v481 = vadd.f32 %v452, %v473
      %v482 = vadd.f32 %v453, %v474
      %v483 = vadd.f32 %v454, %v475
      %v484 = vadd.f32 %v455, %v476
      %v485 = vadd.f32 %v456, %v477
      %v486 = vadd.f32 %v457, %v478
      %v487 = vld [vmem:[%s3 + $0x4] sm:$0x1]
      %v488 = vld [vmem:[%s346 + $0x1] sm:$0xff]
      %v489 = vld [vmem:[%s346 + $0x11] sm:$0xff]
      %v490 = vld [vmem:[%s346 + $0x21] sm:$0xff]
      %v491 = vld [vmem:[%s346 + $0x31] sm:$0xff]
      %v492 = vld [vmem:[%s346 + $0x41] sm:$0xff]
      %v493 = vld [vmem:[%s346 + $0x51] sm:$0xff]
      %v494 = vld [vmem:[%s346 + $0x61] sm:$0xff]
      %v495 = vld [vmem:[%s346 + $0x71] sm:$0xff]
      %v496 = vlaneseq
      %v497 = vshrl.u32 %v496, 7
      %v498 = vsub.s32 0, %v497
      %v499 = vrot.slane %v487, %v498
      %v500 = vmul.f32 %v488, %v499
      %v501 = vmul.f32 %v489, %v499
      %v502 = vmul.f32 %v490, %v499
      %v503 = vmul.f32 %v491, %v499
      %v504 = vmul.f32 %v492, %v499
      %v505 = vmul.f32 %v493, %v499
      %v506 = vmul.f32 %v494, %v499
      %v507 = vmul.f32 %v495, %v499
      %v508 = vadd.f32 %v479, %v500
      %v509 = vadd.f32 %v480, %v501
      %v510 = vadd.f32 %v481, %v502
      %v511 = vadd.f32 %v482, %v503
      %v512 = vadd.f32 %v483, %v504
      %v513 = vadd.f32 %v484, %v505
      %v514 = vadd.f32 %v485, %v506
      %v515 = vadd.f32 %v486, %v507
      %v516 = vld [vmem:[%s3 + $0x5] sm:$0x1]
      %v517 = vld [vmem:[%s346 + $0x2] sm:$0xff]
      %v518 = vld [vmem:[%s346 + $0x12] sm:$0xff]
      %v519 = vld [vmem:[%s346 + $0x22] sm:$0xff]
      %v520 = vld [vmem:[%s346 + $0x32] sm:$0xff]
      %v521 = vld [vmem:[%s346 + $0x42] sm:$0xff]
      %v522 = vld [vmem:[%s346 + $0x52] sm:$0xff]
      %v523 = vld [vmem:[%s346 + $0x62] sm:$0xff]
      %v524 = vld [vmem:[%s346 + $0x72] sm:$0xff]
      %v525 = vlaneseq
      %v526 = vshrl.u32 %v525, 7
      %v527 = vsub.s32 0, %v526
      %v528 = vrot.slane %v516, %v527
      %v529 = vmul.f32 %v517, %v528
      %v530 = vmul.f32 %v518, %v528
      %v531 = vmul.f32 %v519, %v528
      %v532 = vmul.f32 %v520, %v528
      %v533 = vmul.f32 %v521, %v528
      %v534 = vmul.f32 %v522, %v528
      %v535 = vmul.f32 %v523, %v528
      %v536 = vmul.f32 %v524, %v528
      %v537 = vadd.f32 %v508, %v529
      %v538 = vadd.f32 %v509, %v530
      %v539 = vadd.f32 %v510, %v531
      %v540 = vadd.f32 %v511, %v532
      %v541 = vadd.f32 %v512, %v533
      %v542 = vadd.f32 %v513, %v534
      %v543 = vadd.f32 %v514, %v535
      %v544 = vadd.f32 %v515, %v536
      %v545 = vld [vmem:[%s3 + $0x6] sm:$0x1]
      %s546 = scalar_lea.vmem [#allocation2], 32
      %v547 = vld [vmem:[%s546] sm:$0xff]
      %v548 = vld [vmem:[%s546 + $0x10] sm:$0xff]
      %v549 = vld [vmem:[%s546 + $0x20] sm:$0xff]
      %v550 = vld [vmem:[%s546 + $0x30] sm:$0xff]
      %v551 = vld [vmem:[%s546 + $0x40] sm:$0xff]
      %v552 = vld [vmem:[%s546 + $0x50] sm:$0xff]
      %v553 = vld [vmem:[%s546 + $0x60] sm:$0xff]
      %v554 = vld [vmem:[%s546 + $0x70] sm:$0xff]
      %v555 = vlaneseq
      %v556 = vshrl.u32 %v555, 7
      %v557 = vsub.s32 0, %v556
      %v558 = vrot.slane %v545, %v557
      %v559 = vmul.f32 %v547, %v558
      %v560 = vmul.f32 %v548, %v558
      %v561 = vmul.f32 %v549, %v558
      %v562 = vmul.f32 %v550, %v558
      %v563 = vmul.f32 %v551, %v558
      %v564 = vmul.f32 %v552, %v558
      %v565 = vmul.f32 %v553, %v558
      %v566 = vmul.f32 %v554, %v558
      %v567 = vadd.f32 %v537, %v559
      %v568 = vadd.f32 %v538, %v560
      %v569 = vadd.f32 %v539, %v561
      %v570 = vadd.f32 %v540, %v562
      %v571 = vadd.f32 %v541, %v563
      %v572 = vadd.f32 %v542, %v564
      %v573 = vadd.f32 %v543, %v565
      %v574 = vadd.f32 %v544, %v566
      %v575 = vld [vmem:[%s3 + $0x7] sm:$0x1]
      %v576 = vld [vmem:[%s546 + $0x1] sm:$0xff]
      %v577 = vld [vmem:[%s546 + $0x11] sm:$0xff]
      %v578 = vld [vmem:[%s546 + $0x21] sm:$0xff]
      %v579 = vld [vmem:[%s546 + $0x31] sm:$0xff]
      %v580 = vld [vmem:[%s546 + $0x41] sm:$0xff]
      %v581 = vld [vmem:[%s546 + $0x51] sm:$0xff]
      %v582 = vld [vmem:[%s546 + $0x61] sm:$0xff]
      %v583 = vld [vmem:[%s546 + $0x71] sm:$0xff]
      %v584 = vlaneseq
      %v585 = vshrl.u32 %v584, 7
      %v586 = vsub.s32 0, %v585
      %v587 = vrot.slane %v575, %v586
      %v588 = vmul.f32 %v576, %v587
      %v589 = vmul.f32 %v577, %v587
      %v590 = vmul.f32 %v578, %v587
      %v591 = vmul.f32 %v579, %v587
      %v592 = vmul.f32 %v580, %v587
      %v593 = vmul.f32 %v581, %v587
      %v594 = vmul.f32 %v582, %v587
      %v595 = vmul.f32 %v583, %v587
      %v596 = vadd.f32 %v567, %v588
      %v597 = vadd.f32 %v568, %v589
      %v598 = vadd.f32 %v569, %v590
      %v599 = vadd.f32 %v570, %v591
      %v600 = vadd.f32 %v571, %v592
      %v601 = vadd.f32 %v572, %v593
      %v602 = vadd.f32 %v573, %v594
      %v603 = vadd.f32 %v574, %v595
      %v604 = vld [vmem:[%s3 + $0x8] sm:$0x1]
      %v605 = vld [vmem:[%s546 + $0x2] sm:$0xff]
      %v606 = vld [vmem:[%s546 + $0x12] sm:$0xff]
      %v607 = vld [vmem:[%s546 + $0x22] sm:$0xff]
      %v608 = vld [vmem:[%s546 + $0x32] sm:$0xff]
      %v609 = vld [vmem:[%s546 + $0x42] sm:$0xff]
      %v610 = vld [vmem:[%s546 + $0x52] sm:$0xff]
      %v611 = vld [vmem:[%s546 + $0x62] sm:$0xff]
      %v612 = vld [vmem:[%s546 + $0x72] sm:$0xff]
      %v613 = vlaneseq
      %v614 = vshrl.u32 %v613, 7
      %v615 = vsub.s32 0, %v614
      %v616 = vrot.slane %v604, %v615
      %v617 = vmul.f32 %v605, %v616
      %v618 = vmul.f32 %v606, %v616
      %v619 = vmul.f32 %v607, %v616
      %v620 = vmul.f32 %v608, %v616
      %v621 = vmul.f32 %v609, %v616
      %v622 = vmul.f32 %v610, %v616
      %v623 = vmul.f32 %v611, %v616
      %v624 = vmul.f32 %v612, %v616
      %v625 = vadd.f32 %v596, %v617
      %v626 = vadd.f32 %v597, %v618
      %v627 = vadd.f32 %v598, %v619
      %v628 = vadd.f32 %v599, %v620
      %v629 = vadd.f32 %v600, %v621
      %v630 = vadd.f32 %v601, %v622
      %v631 = vadd.f32 %v602, %v623
      %v632 = vadd.f32 %v603, %v624
      %v633 = vld [vmem:[%s4] sm:$0x1]
      %v635 = vlaneseq
      %v636 = vshrl.u32 %v635, 7
      %v637 = vsub.s32 0, %v636
      %v638 = vrot.slane %v633, %v637
      %v640 = vadd.f32 %v625, %v638
      %v641 = vadd.f32 %v626, %v638
      %v642 = vadd.f32 %v627, %v638
      %v643 = vadd.f32 %v628, %v638
      %v644 = vadd.f32 %v629, %v638
      %v645 = vadd.f32 %v630, %v638
      %v646 = vadd.f32 %v631, %v638
      %v647 = vadd.f32 %v632, %v638
      %648 = vst [vmem:[%s258] sm:$0xff] %v640
      %649 = vst [vmem:[%s258 + $0x8] sm:$0xff] %v641
      %650 = vst [vmem:[%s258 + $0x10] sm:$0xff] %v642
      %651 = vst [vmem:[%s258 + $0x18] sm:$0xff] %v643
      %652 = vst [vmem:[%s258 + $0x20] sm:$0xff] %v644
      %653 = vst [vmem:[%s258 + $0x28] sm:$0xff] %v645
      %654 = vst [vmem:[%s258 + $0x30] sm:$0xff] %v646
      %655 = vst [vmem:[%s258 + $0x38] sm:$0xff] %v647
      %v656 = vadd.f32 %v640, %v641
      %v657 = vadd.f32 %v656, %v642
      %v658 = vadd.f32 %v657, %v643
      %v659 = vadd.f32 %v658, %v644
      %v660 = vadd.f32 %v659, %v645
      %v661 = vadd.f32 %v660, %v646
      %v662 = vadd.f32 %v661, %v647
      %v663 = vrot.slane %v662, 4
      %v664 = vadd.f32 %v662, %v663
      %v665 = vrot.slane %v664, 2
      %v666 = vadd.f32 %v664, %v665
      %v667 = vrot.slane %v666, 1
      %v668 = vadd.f32 %v666, %v667
      %669 = vst [vmem:[%s262] sm:$0x1] %v668
      %v670 = vmul.f32 %v640, %v640
      %v671 = vmul.f32 %v641, %v641
      %v672 = vmul.f32 %v642, %v642
      %v673 = vmul.f32 %v643, %v643
      %v674 = vmul.f32 %v644, %v644
      %v675 = vmul.f32 %v645, %v645
      %v676 = vmul.f32 %v646, %v646
      %v677 = vmul.f32 %v647, %v647
      %v678 = vadd.f32 %v670, %v671
      %v679 = vadd.f32 %v678, %v672
      %v680 = vadd.f32 %v679, %v673
      %v681 = vadd.f32 %v680, %v674
      %v682 = vadd.f32 %v681, %v675
      %v683 = vadd.f32 %v682, %v676
      %v684 = vadd.f32 %v683, %v677
      %v685 = vrot.slane %v684, 4
      %v686 = vadd.f32 %v684, %v685
      %v687 = vrot.slane %v686, 2
      %v688 = vadd.f32 %v686, %v687
      %v689 = vrot.slane %v688, 1
      %v690 = vadd.f32 %v688, %v689
      %691 = vst [vmem:[%s262 + $0x1] sm:$0x1] %v690
      %p692 = scmp.lt.s32.totalorder %s18, 1
      %s693 = scalar_select %p692, %s18, 1
      %s694 = smul.addr %s693, 8
      %s695 = smul.addr %s694, 8
      %s696 = scalar_lea.vmem %s5, %s695
      %p697 = scmp.lt.s32.totalorder %s18, 1
      %s698 = scalar_select %p697, %s18, 1
      %s699 = smul.addr %s698, 2
      %s700 = scalar_lea.vmem %s6, %s699
      // Predicated region
      $region41: #{_lambda_.4} parent=39 // pred_check
        %p701 = pneg %p146
      $region42: #{_lambda_.4} parent=39 // pred_check_branch
        %703 = sbr.rel (%p701) target = $region44
      $region43: #{_lambda_.4} parent=39 // pred_region
        _
      $region44: #{_lambda_.4} parent=39 // pred_fallthru
        _
      // Predicated region
      $region45: #{_lambda_.4} parent=39 // pred_check
        %p704 = pneg %p172
      $region46: #{_lambda_.4} parent=39 // pred_check_branch
        %706 = sbr.rel (%p704) target = $region48
      $region47: #{_lambda_.4} parent=39 // pred_region
        _
      $region48: #{_lambda_.4} parent=39 // pred_fallthru
        _
    $region40: #{_lambda_.4} parent=5 // pred_fallthru
      _
    %p707 = scmp.le.s32.totalorder 2, %s13
    // Predicated region
    $region49: #{_lambda_.4} parent=5 // pred_check
      %p708 = pneg %p707
    $region50: #{_lambda_.4} parent=5 // pred_check_branch
      %710 = sbr.rel (%p708) target = $region52
    $region51: #{_lambda_.4} parent=5 // pred_region
      %s711 = ssub.s32 %s13, 2
      // Predicated region
      $region53: #{_lambda_.4} parent=51 // pred_check
        %p712 = pneg %p152
      $region54: #{_lambda_.4} parent=51 // pred_check_branch
        %714 = sbr.rel (%p712) target = $region56
      $region55: #{_lambda_.4} parent=51 // pred_region
        %p715 = scmp.lt.s32.totalorder %s19, 1
        %s716 = scalar_select %p715, %s19, 1
        %s717 = smul.addr %s716, 8
        %s718 = smul.addr %s717, 8
        %s719 = scalar_lea.vmem %s5, %s718
      $region56: #{_lambda_.4} parent=51 // pred_fallthru
        _
      // Predicated region
      $region57: #{_lambda_.4} parent=51 // pred_check
        %p720 = pneg %p178
      $region58: #{_lambda_.4} parent=51 // pred_check_branch
        %722 = sbr.rel (%p720) target = $region60
      $region59: #{_lambda_.4} parent=51 // pred_region
        %p723 = scmp.lt.s32.totalorder %s19, 1
        %s724 = scalar_select %p723, %s19, 1
        %s725 = smul.addr %s724, 2
        %s726 = scalar_lea.vmem %s6, %s725
      $region60: #{_lambda_.4} parent=51 // pred_fallthru
        _
    $region52: #{_lambda_.4} parent=5 // pred_fallthru
      _
  $region6: #{_lambda_.4} parent=0 // loop_footer
    %s17 = sadd.s32 1, %s13
  $region7: #{_lambda_.4} parent=0 // loop_footer_branch
    %12 = sbr.rel target = $region3
  $region8: #{_lambda_.4} parent=0 // loop_exit
    _

// kernel: _lambda_.5
$region0: #{_lambda_.5}
  #allocation0 [shape = 'u32[]', space=smem, size = 0x4, offset = 0x4, fixed_abs, tag = 'smem constant byte address 0x4 - core index']
  #allocation1 [shape = 'u32[144,128]{1,0:T(1,128)}', space=vmem, size = 0x12000, scoped, tag = 'internal scratch']
  %s0 = inlined_call_operand.vmem [shape: f32[128,128], index: 0, kind: input, shape index: {}]
  %s1 = inlined_call_operand.vmem [shape: f32[1,128], index: 1, kind: input, shape index: {}]
  %s2 = inlined_call_operand.vmem [shape: f32[1,128], index: 2, kind: input, shape index: {}]
  %s3 = inlined_call_operand.vmem [shape: f32[128,128], index: 3, kind: input, shape index: {}]
  %s4 = inlined_call_operand.vmem [shape: f32[1,128], index: 4, kind: input, shape index: {}]
  %s5 = inlined_call_operand.vmem [shape: f32[128,128], index: 5, kind: output, shape index: {}]
  %s6 = sld [smem:[#allocation0]]
  $region30: #{_lambda_.5} parent=0
    _
  %s8 = ssub.s32 1, %s6
  %s9 = scalar_select 0, %s8, %s6
  // Predicated region
  $region2: #{_lambda_.5} parent=0 // pred_check
    _
  $region3: #{_lambda_.5} parent=0 // pred_check_branch
    %11 = sbr.rel (0) target = $region5
  $region4: #{_lambda_.5} parent=0 // pred_region
    _
  $region5: #{_lambda_.5} parent=0 // pred_fallthru
    _
  // Predicated region
  $region6: #{_lambda_.5} parent=0 // pred_check
    _
  $region7: #{_lambda_.5} parent=0 // pred_check_branch
    %13 = sbr.rel (0) target = $region9
  $region8: #{_lambda_.5} parent=0 // pred_region
    _
  $region9: #{_lambda_.5} parent=0 // pred_fallthru
    _
  // Predicated region
  $region10: #{_lambda_.5} parent=0 // pred_check
    _
  $region11: #{_lambda_.5} parent=0 // pred_check_branch
    %15 = sbr.rel (0) target = $region13
  $region12: #{_lambda_.5} parent=0 // pred_region
    _
  $region13: #{_lambda_.5} parent=0 // pred_fallthru
    _
  // Predicated region
  $region14: #{_lambda_.5} parent=0 // pred_check
    _
  $region15: #{_lambda_.5} parent=0 // pred_check_branch
    %17 = sbr.rel (0) target = $region17
  $region16: #{_lambda_.5} parent=0 // pred_region
    _
  $region17: #{_lambda_.5} parent=0 // pred_fallthru
    _
  // Predicated region
  $region18: #{_lambda_.5} parent=0 // pred_check
    _
  $region19: #{_lambda_.5} parent=0 // pred_check_branch
    %19 = sbr.rel (0) target = $region21
  $region20: #{_lambda_.5} parent=0 // pred_region
    _
  $region21: #{_lambda_.5} parent=0 // pred_fallthru
    _
  %v20 = vld [vmem:[%s0] sm:$0xff]
  %v21 = vld [vmem:[%s0 + $0x8] sm:$0xff]
  %v22 = vld [vmem:[%s0 + $0x10] sm:$0xff]
  %v23 = vld [vmem:[%s0 + $0x18] sm:$0xff]
  %v24 = vld [vmem:[%s0 + $0x20] sm:$0xff]
  %v25 = vld [vmem:[%s0 + $0x28] sm:$0xff]
  %v26 = vld [vmem:[%s0 + $0x30] sm:$0xff]
  %v27 = vld [vmem:[%s0 + $0x38] sm:$0xff]
  %v28 = vld [vmem:[%s0 + $0x40] sm:$0xff]
  %v29 = vld [vmem:[%s0 + $0x48] sm:$0xff]
  %v30 = vld [vmem:[%s0 + $0x50] sm:$0xff]
  %v31 = vld [vmem:[%s0 + $0x58] sm:$0xff]
  %v32 = vld [vmem:[%s0 + $0x60] sm:$0xff]
  %v33 = vld [vmem:[%s0 + $0x68] sm:$0xff]
  %v34 = vld [vmem:[%s0 + $0x70] sm:$0xff]
  %v35 = vld [vmem:[%s0 + $0x78] sm:$0xff]
  %v36 = vld [vmem:[%s1] sm:$0x1]
  %v38 = vlaneseq
  %v39 = vshrl.u32 %v38, 7
  %v40 = vsub.s32 0, %v39
  %v41 = vrot.slane %v36, %v40
  %v43 = vmul.f32 %v20, %v41
  %v44 = vmul.f32 %v21, %v41
  %v45 = vmul.f32 %v22, %v41
  %v46 = vmul.f32 %v23, %v41
  %v47 = vmul.f32 %v24, %v41
  %v48 = vmul.f32 %v25, %v41
  %v49 = vmul.f32 %v26, %v41
  %v50 = vmul.f32 %v27, %v41
  %v51 = vmul.f32 %v28, %v41
  %v52 = vmul.f32 %v29, %v41
  %v53 = vmul.f32 %v30, %v41
  %v54 = vmul.f32 %v31, %v41
  %v55 = vmul.f32 %v32, %v41
  %v56 = vmul.f32 %v33, %v41
  %v57 = vmul.f32 %v34, %v41
  %v58 = vmul.f32 %v35, %v41
  %v59 = vld [vmem:[%s2] sm:$0x1]
  %v61 = vlaneseq
  %v62 = vshrl.u32 %v61, 7
  %v63 = vsub.s32 0, %v62
  %v64 = vrot.slane %v59, %v63
  %v66 = vadd.f32 %v43, %v64
  %v67 = vadd.f32 %v44, %v64
  %v68 = vadd.f32 %v45, %v64
  %v69 = vadd.f32 %v46, %v64
  %v70 = vadd.f32 %v47, %v64
  %v71 = vadd.f32 %v48, %v64
  %v72 = vadd.f32 %v49, %v64
  %v73 = vadd.f32 %v50, %v64
  %v74 = vadd.f32 %v51, %v64
  %v75 = vadd.f32 %v52, %v64
  %v76 = vadd.f32 %v53, %v64
  %v77 = vadd.f32 %v54, %v64
  %v78 = vadd.f32 %v55, %v64
  %v79 = vadd.f32 %v56, %v64
  %v80 = vadd.f32 %v57, %v64
  %v81 = vadd.f32 %v58, %v64
  %v82 = vmul.f32 %v66, 0.5
  %v83 = vmul.f32 %v67, 0.5
  %v84 = vmul.f32 %v68, 0.5
  %v85 = vmul.f32 %v69, 0.5
  %v86 = vmul.f32 %v70, 0.5
  %v87 = vmul.f32 %v71, 0.5
  %v88 = vmul.f32 %v72, 0.5
  %v89 = vmul.f32 %v73, 0.5
  %v90 = vmul.f32 %v74, 0.5
  %v91 = vmul.f32 %v75, 0.5
  %v92 = vmul.f32 %v76, 0.5
  %v93 = vmul.f32 %v77, 0.5
  %v94 = vmul.f32 %v78, 0.5
  %v95 = vmul.f32 %v79, 0.5
  %v96 = vmul.f32 %v80, 0.5
  %v97 = vmul.f32 %v81, 0.5
  %v98 = vmul.f32 %v66, 0.70710677
  %v99 = vmul.f32 %v67, 0.70710677
  %v100 = vmul.f32 %v68, 0.70710677
  %v101 = vmul.f32 %v69, 0.70710677
  %v102 = vmul.f32 %v70, 0.70710677
  %v103 = vmul.f32 %v71, 0.70710677
  %v104 = vmul.f32 %v72, 0.70710677
  %v105 = vmul.f32 %v73, 0.70710677
  %v106 = vmul.f32 %v74, 0.70710677
  %v107 = vmul.f32 %v75, 0.70710677
  %v108 = vmul.f32 %v76, 0.70710677
  %v109 = vmul.f32 %v77, 0.70710677
  %v110 = vmul.f32 %v78, 0.70710677
  %v111 = vmul.f32 %v79, 0.70710677
  %v112 = vmul.f32 %v80, 0.70710677
  %v113 = vmul.f32 %v81, 0.70710677
  %v114 = verf.f32.pop %v98
  %v115 = verf.f32.pop %v99
  %v116 = verf.f32.pop %v100
  %v117 = verf.f32.pop %v101
  %v118 = verf.f32.pop %v102
  %v119 = verf.f32.pop %v103
  %v120 = verf.f32.pop %v104
  %v121 = verf.f32.pop %v105
  %v122 = verf.f32.pop %v106
  %v123 = verf.f32.pop %v107
  %v124 = verf.f32.pop %v108
  %v125 = verf.f32.pop %v109
  %v126 = verf.f32.pop %v110
  %v127 = verf.f32.pop %v111
  %v128 = verf.f32.pop %v112
  %v129 = verf.f32.pop %v113
  %v130 = vadd.f32 %v114, 1.0
  %v131 = vadd.f32 %v115, 1.0
  %v132 = vadd.f32 %v116, 1.0
  %v133 = vadd.f32 %v117, 1.0
  %v134 = vadd.f32 %v118, 1.0
  %v135 = vadd.f32 %v119, 1.0
  %v136 = vadd.f32 %v120, 1.0
  %v137 = vadd.f32 %v121, 1.0
  %v138 = vadd.f32 %v122, 1.0
  %v139 = vadd.f32 %v123, 1.0
  %v140 = vadd.f32 %v124, 1.0
  %v141 = vadd.f32 %v125, 1.0
  %v142 = vadd.f32 %v126, 1.0
  %v143 = vadd.f32 %v127, 1.0
  %v144 = vadd.f32 %v128, 1.0
  %v145 = vadd.f32 %v129, 1.0
  %v146 = vmul.f32 %v82, %v130
  %v147 = vmul.f32 %v83, %v131
  %v148 = vmul.f32 %v84, %v132
  %v149 = vmul.f32 %v85, %v133
  %v150 = vmul.f32 %v86, %v134
  %v151 = vmul.f32 %v87, %v135
  %v152 = vmul.f32 %v88, %v136
  %v153 = vmul.f32 %v89, %v137
  %v154 = vmul.f32 %v90, %v138
  %v155 = vmul.f32 %v91, %v139
  %v156 = vmul.f32 %v92, %v140
  %v157 = vmul.f32 %v93, %v141
  %v158 = vmul.f32 %v94, %v142
  %v159 = vmul.f32 %v95, %v143
  %v160 = vmul.f32 %v96, %v144
  %v161 = vmul.f32 %v97, %v145
  %v162 = vld [vmem:[%s3] sm:$0xff]
  %v163 = vld [vmem:[%s3 + $0x8] sm:$0xff]
  %v164 = vld [vmem:[%s3 + $0x10] sm:$0xff]
  %v165 = vld [vmem:[%s3 + $0x18] sm:$0xff]
  %v166 = vld [vmem:[%s3 + $0x20] sm:$0xff]
  %v167 = vld [vmem:[%s3 + $0x28] sm:$0xff]
  %v168 = vld [vmem:[%s3 + $0x30] sm:$0xff]
  %v169 = vld [vmem:[%s3 + $0x38] sm:$0xff]
  %v170 = vld [vmem:[%s3 + $0x40] sm:$0xff]
  %v171 = vld [vmem:[%s3 + $0x48] sm:$0xff]
  %v172 = vld [vmem:[%s3 + $0x50] sm:$0xff]
  %v173 = vld [vmem:[%s3 + $0x58] sm:$0xff]
  %v174 = vld [vmem:[%s3 + $0x60] sm:$0xff]
  %v175 = vld [vmem:[%s3 + $0x68] sm:$0xff]
  %v176 = vld [vmem:[%s3 + $0x70] sm:$0xff]
  %v177 = vld [vmem:[%s3 + $0x78] sm:$0xff]
  %v178 = vld [vmem:[%s4] sm:$0x1]
  %v180 = vlaneseq
  %v181 = vshrl.u32 %v180, 7
  %v182 = vsub.s32 0, %v181
  %v183 = vrot.slane %v178, %v182
  %185 = vmatprep.subr.mxu0 0.0
  %186 = vmatpush1.msra.mxu0 %v162
  %187 = vmatprep.subr.mxu0 0.0
  %188 = vmatpush1.msra.mxu0 %v163
  %189 = vmatprep.subr.mxu0 0.0
  %190 = vmatpush1.msra.mxu0 %v164
  %191 = vmatprep.subr.mxu0 0.0
  %192 = vmatpush1.msra.mxu0 %v165
  %193 = vmatprep.subr.mxu0 0.0
  %194 = vmatpush1.msra.mxu0 %v166
  %195 = vmatprep.subr.mxu0 0.0
  %196 = vmatpush1.msra.mxu0 %v167
  %197 = vmatprep.subr.mxu0 0.0
  %198 = vmatpush1.msra.mxu0 %v168
  %199 = vmatprep.subr.mxu0 0.0
  %200 = vmatpush1.msra.mxu0 %v169
  %201 = vmatprep.subr.mxu0 0.0
  %202 = vmatpush1.msra.mxu0 %v170
  %203 = vmatprep.subr.mxu0 0.0
  %204 = vmatpush1.msra.mxu0 %v171
  %205 = vmatprep.subr.mxu0 0.0
  %206 = vmatpush1.msra.mxu0 %v172
  %207 = vmatprep.subr.mxu0 0.0
  %208 = vmatpush1.msra.mxu0 %v173
  %209 = vmatprep.subr.mxu0 0.0
  %210 = vmatpush1.msra.mxu0 %v174
  %211 = vmatprep.subr.mxu0 0.0
  %212 = vmatpush1.msra.mxu0 %v175
  %213 = vmatprep.subr.mxu0 0.0
  %214 = vmatpush1.msra.mxu0 %v176
  %215 = vmatprep.subr.mxu0 0.0
  %216 = vmatpush1.msra.mxu0 %v177
  %217 = vmatprep.subr.mxu0 0.0
  %218 = vmatpush1.msra.mxu0 0.0
  %219 = vmatprep.subr.mxu0 0.0
  %220 = vmatpush1.msra.mxu0 0.0
  %221 = vmatprep.subr.mxu0 0.0
  %222 = vmatpush1.msra.mxu0 0.0
  %223 = vmatprep.subr.mxu0 0.0
  %224 = vmatpush1.msra.mxu0 0.0
  %225 = vmatprep.subr.mxu0 0.0
  %226 = vmatpush1.msra.mxu0 0.0
  %227 = vmatprep.subr.mxu0 0.0
  %228 = vmatpush1.msra.mxu0 0.0
  %229 = vmatprep.subr.mxu0 0.0
  %230 = vmatpush1.msra.mxu0 0.0
  %231 = vmatprep.subr.mxu0 0.0
  %232 = vmatpush1.msra.mxu0 0.0
  %233 = vmatprep.subr.mxu0 0.0
  %234 = vmatpush1.msra.mxu0 0.0
  %235 = vmatprep.subr.mxu0 0.0
  %236 = vmatpush1.msra.mxu0 0.0
  %237 = vmatprep.subr.mxu0 0.0
  %238 = vmatpush1.msra.mxu0 0.0
  %239 = vmatprep.subr.mxu0 0.0
  %240 = vmatpush1.msra.mxu0 0.0
  %241 = vmatprep.subr.mxu0 0.0
  %242 = vmatpush1.msra.mxu0 0.0
  %243 = vmatprep.subr.mxu0 0.0
  %244 = vmatpush1.msra.mxu0 0.0
  %245 = vmatprep.subr.mxu0 0.0
  %246 = vmatpush1.msra.mxu0 0.0
  %247 = vmatprep.subr.mxu0 0.0
  %248 = vmatpush1.msra.mxu0 0.0
  %249 = vmatprep.mubr.f32.mxu0 0.0
  %250 = vmatmul.mubr.f32.gmra.mrb[0].mxu0 %v146
  %v251 = vpop.f32.mrb[0].mxu0
  %v252 = vadd.f32 %v183, %v251
  %v253 = vpop.f32.mrb[0].mxu0
  %254 = vmatprep.mubr.f32.mxu0 0.0
  %255 = vmatmul.mubr.f32.gmra.mrb[0].mxu0 %v147
  %v256 = vpop.f32.mrb[0].mxu0
  %v257 = vadd.f32 %v183, %v256
  %v258 = vpop.f32.mrb[0].mxu0
  %259 = vmatprep.mubr.f32.mxu0 0.0
  %260 = vmatmul.mubr.f32.gmra.mrb[0].mxu0 %v148
  %v261 = vpop.f32.mrb[0].mxu0
  %v262 = vadd.f32 %v183, %v261
  %v263 = vpop.f32.mrb[0].mxu0
  %264 = vmatprep.mubr.f32.mxu0 0.0
  %265 = vmatmul.mubr.f32.gmra.mrb[0].mxu0 %v149
  %v266 = vpop.f32.mrb[0].mxu0
  %v267 = vadd.f32 %v183, %v266
  %v268 = vpop.f32.mrb[0].mxu0
  %269 = vmatprep.mubr.f32.mxu0 0.0
  %270 = vmatmul.mubr.f32.gmra.mrb[0].mxu0 %v150
  %v271 = vpop.f32.mrb[0].mxu0
  %v272 = vadd.f32 %v183, %v271
  %v273 = vpop.f32.mrb[0].mxu0
  %274 = vmatprep.mubr.f32.mxu0 0.0
  %275 = vmatmul.mubr.f32.gmra.mrb[0].mxu0 %v151
  %v276 = vpop.f32.mrb[0].mxu0
  %v277 = vadd.f32 %v183, %v276
  %v278 = vpop.f32.mrb[0].mxu0
  %279 = vmatprep.mubr.f32.mxu0 0.0
  %280 = vmatmul.mubr.f32.gmra.mrb[0].mxu0 %v152
  %v281 = vpop.f32.mrb[0].mxu0
  %v282 = vadd.f32 %v183, %v281
  %v283 = vpop.f32.mrb[0].mxu0
  %284 = vmatprep.mubr.f32.mxu0 0.0
  %285 = vmatmul.mubr.f32.gmra.mrb[0].mxu0 %v153
  %v286 = vpop.f32.mrb[0].mxu0
  %v287 = vadd.f32 %v183, %v286
  %v288 = vpop.f32.mrb[0].mxu0
  %289 = vmatprep.mubr.f32.mxu0 0.0
  %290 = vmatmul.mubr.f32.gmra.mrb[0].mxu0 %v154
  %v291 = vpop.f32.mrb[0].mxu0
  %v292 = vadd.f32 %v183, %v291
  %v293 = vpop.f32.mrb[0].mxu0
  %294 = vmatprep.mubr.f32.mxu0 0.0
  %295 = vmatmul.mubr.f32.gmra.mrb[0].mxu0 %v155
  %v296 = vpop.f32.mrb[0].mxu0
  %v297 = vadd.f32 %v183, %v296
  %v298 = vpop.f32.mrb[0].mxu0
  %299 = vmatprep.mubr.f32.mxu0 0.0
  %300 = vmatmul.mubr.f32.gmra.mrb[0].mxu0 %v156
  %v301 = vpop.f32.mrb[0].mxu0
  %v302 = vadd.f32 %v183, %v301
  %v303 = vpop.f32.mrb[0].mxu0
  %304 = vmatprep.mubr.f32.mxu0 0.0
  %305 = vmatmul.mubr.f32.gmra.mrb[0].mxu0 %v157
  %v306 = vpop.f32.mrb[0].mxu0
  %v307 = vadd.f32 %v183, %v306
  %v308 = vpop.f32.mrb[0].mxu0
  %309 = vmatprep.mubr.f32.mxu0 0.0
  %310 = vmatmul.mubr.f32.gmra.mrb[0].mxu0 %v158
  %v311 = vpop.f32.mrb[0].mxu0
  %v312 = vadd.f32 %v183, %v311
  %v313 = vpop.f32.mrb[0].mxu0
  %314 = vmatprep.mubr.f32.mxu0 0.0
  %315 = vmatmul.mubr.f32.gmra.mrb[0].mxu0 %v159
  %v316 = vpop.f32.mrb[0].mxu0
  %v317 = vadd.f32 %v183, %v316
  %v318 = vpop.f32.mrb[0].mxu0
  %319 = vmatprep.mubr.f32.mxu0 0.0
  %320 = vmatmul.mubr.f32.gmra.mrb[0].mxu0 %v160
  %v321 = vpop.f32.mrb[0].mxu0
  %v322 = vadd.f32 %v183, %v321
  %v323 = vpop.f32.mrb[0].mxu0
  %324 = vmatprep.mubr.f32.mxu0 0.0
  %325 = vmatmul.mubr.f32.gmra.mrb[0].mxu0 %v161
  %v326 = vpop.f32.mrb[0].mxu0
  %v327 = vadd.f32 %v183, %v326
  %v328 = vpop.f32.mrb[0].mxu0
  %329 = vdwg.mxu0
  %330 = vst [vmem:[%s5] sm:$0xff] %v252
  %331 = vst [vmem:[%s5 + $0x8] sm:$0xff] %v257
  %332 = vst [vmem:[%s5 + $0x10] sm:$0xff] %v262
  %333 = vst [vmem:[%s5 + $0x18] sm:$0xff] %v267
  %334 = vst [vmem:[%s5 + $0x20] sm:$0xff] %v272
  %335 = vst [vmem:[%s5 + $0x28] sm:$0xff] %v277
  %336 = vst [vmem:[%s5 + $0x30] sm:$0xff] %v282
  %337 = vst [vmem:[%s5 + $0x38] sm:$0xff] %v287
  %338 = vst [vmem:[%s5 + $0x40] sm:$0xff] %v292
  %339 = vst [vmem:[%s5 + $0x48] sm:$0xff] %v297
  %340 = vst [vmem:[%s5 + $0x50] sm:$0xff] %v302
  %341 = vst [vmem:[%s5 + $0x58] sm:$0xff] %v307
  %342 = vst [vmem:[%s5 + $0x60] sm:$0xff] %v312
  %343 = vst [vmem:[%s5 + $0x68] sm:$0xff] %v317
  %344 = vst [vmem:[%s5 + $0x70] sm:$0xff] %v322
  %345 = vst [vmem:[%s5 + $0x78] sm:$0xff] %v327
  // Predicated region
  $region22: #{_lambda_.5} parent=0 // pred_check
    _
  $region23: #{_lambda_.5} parent=0 // pred_check_branch
    %347 = sbr.rel (0) target = $region25
  $region24: #{_lambda_.5} parent=0 // pred_region
    _
  $region25: #{_lambda_.5} parent=0 // pred_fallthru
    _
  // Predicated region
  $region26: #{_lambda_.5} parent=0 // pred_check
    _
  $region27: #{_lambda_.5} parent=0 // pred_check_branch
    %349 = sbr.rel (0) target = $region29
  $region28: #{_lambda_.5} parent=0 // pred_region
    _
  $region29: #{_lambda_.5} parent=0 // pred_fallthru
    _

</llo_original>
